<compile_context>
chip_gen: v7x
topology: tpu7x:2x2x1
jax: 0.10.0
libtpu: 0.0.40
codegen_flags: <defaults>
</compile_context>

<pallas_src>
import jax
import jax.numpy as jnp
from jax.experimental import pallas as pl
from jax.experimental.pallas import tpu as pltpu


# --------------------------------------------------------------------------
# Fused kernel: 3x GraphConv(relu) + per-graph mean pooling, single grid step
# --------------------------------------------------------------------------
def fused_gcn_kernel(a_ref, h_ref, w0_ref, b0_ref, w1_ref, b1_ref,
                     w2_ref, b2_ref, m_ref, inv_ref, o_ref):
    a = a_ref[...]            # (N, N)    bf16 normalized adjacency
    h = h_ref[...]            # (N, d_in) bf16 node features

    def layer(h_bf16, w_ref, b_ref):
        # Weight-first ordering (DGL order when in_feats >= out_feats): the
        # N x N aggregation matmul then runs at width = hidden.
        hw = jnp.dot(h_bf16, w_ref[...], preferred_element_type=jnp.float32)
        z = jnp.dot(a, hw.astype(jnp.bfloat16),
                    preferred_element_type=jnp.float32) + b_ref[...]
        return jnp.maximum(z, 0.0).astype(jnp.bfloat16)

    h = layer(h, w0_ref, b0_ref)
    # TODO(synk): dropout between layers is identity here (inference mode);
    # training-mode dropout would use pltpu.prng_seed + pltpu.prng_random_bits.
    h = layer(h, w1_ref, b1_ref)
    h = layer(h, w2_ref, b2_ref)

    # dgl.mean_nodes: exact 0/1 membership matmul, then f32 1/|V_g| scale.
    pooled = jnp.dot(m_ref[...], h, preferred_element_type=jnp.float32)  # (B, d)
    o_ref[...] = pooled * inv_ref[...]


# --------------------------------------------------------------------------
# pallas_call wrapper
# --------------------------------------------------------------------------
def gcn_forward(a_norm, h0, w0, b0, w1, b1, w2, b2, m_sel, inv_counts):
    """3x GraphConv (relu) + per-graph mean pooling.  bf16 MXU inputs, f32 accum."""
    bf = jnp.bfloat16
    args = (
        a_norm.astype(bf),            # (N, N)  cast A once; halves HBM footprint
        h0.astype(bf),                # (N, d_in)
        w0.astype(bf), b0,            # (d_in, d_h), (1, d_h) f32
        w1.astype(bf), b1,            # (d_h,  d_h), (1, d_h) f32
        w2.astype(bf), b2,            # (d_h,  d_h), (1, d_h) f32
        m_sel.astype(bf),             # (B, N) 0/1 membership (exact in bf16)
        inv_counts,                   # (B, 1) f32 per-graph 1/|V_g|
    )
    bsz = m_sel.shape[0]
    d_out = w2.shape[1]
    vmem = pl.BlockSpec(memory_space=pltpu.MemorySpace.VMEM)
    return pl.pallas_call(
        fused_gcn_kernel,
        out_shape=jax.ShapeDtypeStruct((bsz, d_out), jnp.float32),
        in_specs=[vmem] * len(args),
        out_specs=vmem,
    )(*args)


gcn_forward_jit = jax.jit(gcn_forward)


# --------------------------------------------------------------------------
# Helpers (plain-JAX glue identical to the module's pre/post processing)
# --------------------------------------------------------------------------
def symmetric_normalize(adj):
    """D^-1/2 A D^-1/2 with zero-degree rows zeroed, like DGL norm='both'."""
    deg = jnp.sum(adj, axis=1)
    inv_sqrt = jnp.where(deg > 0, 1.0 / jnp.sqrt(jnp.maximum(deg, 1e-12)), 0.0)
    return adj * inv_sqrt[:, None] * inv_sqrt[None, :]


if __name__ == "__main__":
    key = jax.random.PRNGKey(0)

    # Sizes chosen so vregs / MXU tiles are filled: feature dims = 128, N = 256.
    vocab_size = 64       # rows of embedding_matrix
    in_dim = 128          # embedding dim == GraphConv input dim
    hidden_dim = 128
    seq_len = 8           # instructions per node
    num_graphs = 8
    nodes_per_graph = 32
    num_nodes = num_graphs * nodes_per_graph          # 256

    (k_emb, k_ids, k_adj, k_w0, k_w1, k_w2,
     k_b0, k_b1, k_b2) = jax.random.split(key, 9)

    # Node features: 'mean' node_vec_stg -> mean of embedding rows per node.
    # TODO(synk): TextCNN / Transformer node_vec_stg variants not implemented.
    embedding_matrix = jax.random.normal(k_emb, (vocab_size, in_dim), jnp.float32)
    node_instr_ids = jax.random.randint(k_ids, (num_nodes, seq_len), 0, vocab_size)
    h0 = jnp.mean(embedding_matrix[node_instr_ids], axis=1)          # (N, in_dim)

    # Random symmetric adjacency (no self loops), then symmetric normalization.
    rand = jax.random.uniform(k_adj, (num_nodes, num_nodes))
    adj = (rand < 0.1).astype(jnp.float32)
    adj = jnp.maximum(adj, adj.T)
    adj = adj * (1.0 - jnp.eye(num_nodes, dtype=jnp.float32))
    a_norm = symmetric_normalize(adj)

    # GraphConv weights (Glorot-ish deterministic init) and small random biases.
    def glorot(k, shape):
        fan_in, fan_out = shape
        limit = jnp.sqrt(6.0 / (fan_in + fan_out))
        return jax.random.uniform(k, shape, jnp.float32, -limit, limit)

    w0 = glorot(k_w0, (in_dim, hidden_dim))
    w1 = glorot(k_w1, (hidden_dim, hidden_dim))
    w2 = glorot(k_w2, (hidden_dim, hidden_dim))
    b0 = 0.1 * jax.random.normal(k_b0, (1, hidden_dim), jnp.float32)
    b1 = 0.1 * jax.random.normal(k_b1, (1, hidden_dim), jnp.float32)
    b2 = 0.1 * jax.random.normal(k_b2, (1, hidden_dim), jnp.float32)

    # Graph membership (0/1) matrix and per-graph 1/|V_g| scale (kept in f32).
    graph_ids = jnp.repeat(jnp.arange(num_graphs), nodes_per_graph)            # (N,)
    m_sel = (jnp.arange(num_graphs)[:, None] == graph_ids[None, :]).astype(jnp.float32)
    inv_counts = 1.0 / jnp.sum(m_sel, axis=1, keepdims=True)                   # (B, 1)

    hg = gcn_forward_jit(a_norm, h0, w0, b0, w1, b1, w2, b2, m_sel, inv_counts)
    jax.block_until_ready(hg)

    # Pure-JAX reference that mirrors the kernel's bf16-input / f32-accumulate math.
    def ref(a_f32, h_f32):
        bf = jnp.bfloat16
        a = a_f32.astype(bf)
        h = h_f32.astype(bf)
        for w, b in ((w0, b0), (w1, b1), (w2, b2)):
            hw = jnp.dot(h, w.astype(bf), preferred_element_type=jnp.float32)
            z = jnp.dot(a, hw.astype(bf), preferred_element_type=jnp.float32) + b
            h = jnp.maximum(z, 0.0).astype(bf)
        pooled = jnp.dot(m_sel.astype(bf), h, preferred_element_type=jnp.float32)
        return pooled * inv_counts

    expected = ref(a_norm, h0)
    assert hg.shape == (num_graphs, hidden_dim)
    assert jnp.allclose(hg, expected, atol=1e-2, rtol=1e-2)

    print("KERNEL_OK")
</pallas_src>

<mosaic_0001>
module attributes {stable_mosaic.version = 11 : i64} {
  func.func @fused_gcn_kernel(%arg0: memref<256x256xbf16, #tpu.memory_space<vmem>>, %arg1: memref<256x128xbf16, #tpu.memory_space<vmem>>, %arg2: memref<128x128xbf16, #tpu.memory_space<vmem>>, %arg3: memref<1x128xf32, #tpu.memory_space<vmem>>, %arg4: memref<128x128xbf16, #tpu.memory_space<vmem>>, %arg5: memref<1x128xf32, #tpu.memory_space<vmem>>, %arg6: memref<128x128xbf16, #tpu.memory_space<vmem>>, %arg7: memref<1x128xf32, #tpu.memory_space<vmem>>, %arg8: memref<8x256xbf16, #tpu.memory_space<vmem>>, %arg9: memref<8x1xf32, #tpu.memory_space<vmem>>, %arg10: memref<8x128xf32, #tpu.memory_space<vmem>>) attributes {dimension_semantics = [], scalar_prefetch = 0 : i64, scratch_operands = 0 : i64, tpu.core_type = #tpu.core_type<tc>} {
    %c0 = arith.constant 0 : index
    %c0_0 = arith.constant 0 : index
    %0 = vector.load %arg0[%c0, %c0_0] : memref<256x256xbf16, #tpu.memory_space<vmem>>, vector<256x256xbf16>
    %c0_1 = arith.constant 0 : index
    %c0_2 = arith.constant 0 : index
    %1 = vector.load %arg1[%c0_1, %c0_2] : memref<256x128xbf16, #tpu.memory_space<vmem>>, vector<256x128xbf16>
    %c0_3 = arith.constant 0 : index
    %c0_4 = arith.constant 0 : index
    %2 = vector.load %arg2[%c0_3, %c0_4] : memref<128x128xbf16, #tpu.memory_space<vmem>>, vector<128x128xbf16>
    %cst = arith.constant dense<0.000000e+00> : vector<256x128xf32>
    %3 = tpu.matmul %1, %2, %cst {dimension_numbers = #tpu.dot_dimension_numbers<[1], [0], [0], [1], [0, 0, 1, 1], [], []>} : vector<256x128xbf16>, vector<128x128xbf16>, vector<256x128xf32> -> vector<256x128xf32>
    %4 = arith.truncf %3 : vector<256x128xf32> to vector<256x128xbf16>
    %cst_5 = arith.constant dense<0.000000e+00> : vector<256x128xf32>
    %5 = tpu.matmul %0, %4, %cst_5 {dimension_numbers = #tpu.dot_dimension_numbers<[1], [0], [0], [1], [0, 0, 1, 1], [], []>} : vector<256x256xbf16>, vector<256x128xbf16>, vector<256x128xf32> -> vector<256x128xf32>
    %c0_6 = arith.constant 0 : index
    %c0_7 = arith.constant 0 : index
    %6 = vector.load %arg3[%c0_6, %c0_7] : memref<1x128xf32, #tpu.memory_space<vmem>>, vector<1x128xf32>
    %7 = vector.broadcast %6 : vector<1x128xf32> to vector<256x128xf32>
    %8 = arith.addf %5, %7 : vector<256x128xf32>
    %cst_8 = arith.constant 0.000000e+00 : f32
    %9 = vector.broadcast %cst_8 : f32 to vector<256x128xf32>
    %10 = arith.maximumf %8, %9 : vector<256x128xf32>
    %11 = arith.truncf %10 : vector<256x128xf32> to vector<256x128xbf16>
    %c0_9 = arith.constant 0 : index
    %c0_10 = arith.constant 0 : index
    %12 = vector.load %arg4[%c0_9, %c0_10] : memref<128x128xbf16, #tpu.memory_space<vmem>>, vector<128x128xbf16>
    %cst_11 = arith.constant dense<0.000000e+00> : vector<256x128xf32>
    %13 = tpu.matmul %11, %12, %cst_11 {dimension_numbers = #tpu.dot_dimension_numbers<[1], [0], [0], [1], [0, 0, 1, 1], [], []>} : vector<256x128xbf16>, vector<128x128xbf16>, vector<256x128xf32> -> vector<256x128xf32>
    %14 = arith.truncf %13 : vector<256x128xf32> to vector<256x128xbf16>
    %cst_12 = arith.constant dense<0.000000e+00> : vector<256x128xf32>
    %15 = tpu.matmul %0, %14, %cst_12 {dimension_numbers = #tpu.dot_dimension_numbers<[1], [0], [0], [1], [0, 0, 1, 1], [], []>} : vector<256x256xbf16>, vector<256x128xbf16>, vector<256x128xf32> -> vector<256x128xf32>
    %c0_13 = arith.constant 0 : index
    %c0_14 = arith.constant 0 : index
    %16 = vector.load %arg5[%c0_13, %c0_14] : memref<1x128xf32, #tpu.memory_space<vmem>>, vector<1x128xf32>
    %17 = vector.broadcast %16 : vector<1x128xf32> to vector<256x128xf32>
    %18 = arith.addf %15, %17 : vector<256x128xf32>
    %cst_15 = arith.constant 0.000000e+00 : f32
    %19 = vector.broadcast %cst_15 : f32 to vector<256x128xf32>
    %20 = arith.maximumf %18, %19 : vector<256x128xf32>
    %21 = arith.truncf %20 : vector<256x128xf32> to vector<256x128xbf16>
    %c0_16 = arith.constant 0 : index
    %c0_17 = arith.constant 0 : index
    %22 = vector.load %arg6[%c0_16, %c0_17] : memref<128x128xbf16, #tpu.memory_space<vmem>>, vector<128x128xbf16>
    %cst_18 = arith.constant dense<0.000000e+00> : vector<256x128xf32>
    %23 = tpu.matmul %21, %22, %cst_18 {dimension_numbers = #tpu.dot_dimension_numbers<[1], [0], [0], [1], [0, 0, 1, 1], [], []>} : vector<256x128xbf16>, vector<128x128xbf16>, vector<256x128xf32> -> vector<256x128xf32>
    %24 = arith.truncf %23 : vector<256x128xf32> to vector<256x128xbf16>
    %cst_19 = arith.constant dense<0.000000e+00> : vector<256x128xf32>
    %25 = tpu.matmul %0, %24, %cst_19 {dimension_numbers = #tpu.dot_dimension_numbers<[1], [0], [0], [1], [0, 0, 1, 1], [], []>} : vector<256x256xbf16>, vector<256x128xbf16>, vector<256x128xf32> -> vector<256x128xf32>
    %c0_20 = arith.constant 0 : index
    %c0_21 = arith.constant 0 : index
    %26 = vector.load %arg7[%c0_20, %c0_21] : memref<1x128xf32, #tpu.memory_space<vmem>>, vector<1x128xf32>
    %27 = vector.broadcast %26 : vector<1x128xf32> to vector<256x128xf32>
    %28 = arith.addf %25, %27 : vector<256x128xf32>
    %cst_22 = arith.constant 0.000000e+00 : f32
    %29 = vector.broadcast %cst_22 : f32 to vector<256x128xf32>
    %30 = arith.maximumf %28, %29 : vector<256x128xf32>
    %31 = arith.truncf %30 : vector<256x128xf32> to vector<256x128xbf16>
    %c0_23 = arith.constant 0 : index
    %c0_24 = arith.constant 0 : index
    %32 = vector.load %arg8[%c0_23, %c0_24] : memref<8x256xbf16, #tpu.memory_space<vmem>>, vector<8x256xbf16>
    %cst_25 = arith.constant dense<0.000000e+00> : vector<8x128xf32>
    %33 = tpu.matmul %32, %31, %cst_25 {dimension_numbers = #tpu.dot_dimension_numbers<[1], [0], [0], [1], [0, 0, 1, 1], [], []>} : vector<8x256xbf16>, vector<256x128xbf16>, vector<8x128xf32> -> vector<8x128xf32>
    %c0_26 = arith.constant 0 : index
    %c0_27 = arith.constant 0 : index
    %34 = vector.load %arg9[%c0_26, %c0_27] : memref<8x1xf32, #tpu.memory_space<vmem>>, vector<8x1xf32>
    %35 = vector.broadcast %34 : vector<8x1xf32> to vector<8x128xf32>
    %36 = arith.mulf %33, %35 : vector<8x128xf32>
    %c0_28 = arith.constant 0 : index
    %c0_29 = arith.constant 0 : index
    %37 = vector.load %arg10[%c0_28, %c0_29] : memref<8x128xf32, #tpu.memory_space<vmem>>, vector<8x128xf32>
    tpu.vector_store %arg10[%c0_28, %c0_29], %36 {strides = array<i32>} : memref<8x128xf32, #tpu.memory_space<vmem>>, vector<8x128xf32>,
    return
  }
}

</mosaic_0001>

<llo_original>
// kernel: gcn_forward.1
$region0: #{gcn_forward.1}
  #allocation0 [shape = 'u32[]', space=smem, size = 0x4, offset = 0x4, fixed_abs, tag = 'smem constant byte address 0x4 - core index']
  #allocation1 [shape = 'u32[144,128]{1,0:T(1,128)}', space=vmem, size = 0x12000, scoped, tag = 'internal scratch']
  %s0 = inlined_call_operand.vmem [shape: bf16[256,256], index: 0, kind: input, shape index: {}]
  %s1 = inlined_call_operand.vmem [shape: bf16[256,128], index: 1, kind: input, shape index: {}]
  %s2 = inlined_call_operand.vmem [shape: bf16[128,128], index: 2, kind: input, shape index: {}]
  %s3 = inlined_call_operand.vmem [shape: f32[1,128], index: 3, kind: input, shape index: {}]
  %s4 = inlined_call_operand.vmem [shape: bf16[128,128], index: 4, kind: input, shape index: {}]
  %s5 = inlined_call_operand.vmem [shape: f32[1,128], index: 5, kind: input, shape index: {}]
  %s6 = inlined_call_operand.vmem [shape: bf16[128,128], index: 6, kind: input, shape index: {}]
  %s7 = inlined_call_operand.vmem [shape: f32[1,128], index: 7, kind: input, shape index: {}]
  %s8 = inlined_call_operand.vmem [shape: bf16[8,256], index: 8, kind: input, shape index: {}]
  %s9 = inlined_call_operand.vmem [shape: f32[8,1], index: 9, kind: input, shape index: {}]
  %s10 = inlined_call_operand.hbm [shape: f32[8,128], index: 10, kind: output, shape index: {}]
  %s11 = sld [smem:[#allocation0]]
  $region50: #{gcn_forward.1} parent=0
    _
  %s13 = ssub.s32 1, %s11
  %s14 = scalar_select 0, %s13, %s11
  $region1: #{gcn_forward.1} parent=0
    #allocation2 [shape = 'u8[4096]{0}', space=vmem, size = 0x1000, scoped, tag = 'output window, operand 0, single buffered']
    #allocation3 [shape = 's32[1]{0}', space=sflag, size = 0x4, scoped, tag = 'scoped memory for gcn_forward.1']
    %15 = vsyncpa [#allocation3], 0
    // Predicated region
    $region2: #{gcn_forward.1} parent=1 // pred_check
      _
    $region3: #{gcn_forward.1} parent=1 // pred_check_branch
      %17 = sbr.rel (0) target = $region5
    $region4: #{gcn_forward.1} parent=1 // pred_region
      _
    $region5: #{gcn_forward.1} parent=1 // pred_fallthru
      _
    // Predicated region
    $region6: #{gcn_forward.1} parent=1 // pred_check
      _
    $region7: #{gcn_forward.1} parent=1 // pred_check_branch
      %19 = sbr.rel (0) target = $region9
    $region8: #{gcn_forward.1} parent=1 // pred_region
      _
    $region9: #{gcn_forward.1} parent=1 // pred_fallthru
      _
    // Predicated region
    $region10: #{gcn_forward.1} parent=1 // pred_check
      _
    $region11: #{gcn_forward.1} parent=1 // pred_check_branch
      %21 = sbr.rel (0) target = $region13
    $region12: #{gcn_forward.1} parent=1 // pred_region
      _
    $region13: #{gcn_forward.1} parent=1 // pred_fallthru
      _
    // Predicated region
    $region14: #{gcn_forward.1} parent=1 // pred_check
      _
    $region15: #{gcn_forward.1} parent=1 // pred_check_branch
      %23 = sbr.rel (0) target = $region17
    $region16: #{gcn_forward.1} parent=1 // pred_region
      _
    $region17: #{gcn_forward.1} parent=1 // pred_fallthru
      _
    // Predicated region
    $region18: #{gcn_forward.1} parent=1 // pred_check
      _
    $region19: #{gcn_forward.1} parent=1 // pred_check_branch
      %25 = sbr.rel (0) target = $region21
    $region20: #{gcn_forward.1} parent=1 // pred_region
      _
    $region21: #{gcn_forward.1} parent=1 // pred_fallthru
      _
    // Predicated region
    $region22: #{gcn_forward.1} parent=1 // pred_check
      _
    $region23: #{gcn_forward.1} parent=1 // pred_check_branch
      %27 = sbr.rel (0) target = $region25
    $region24: #{gcn_forward.1} parent=1 // pred_region
      _
    $region25: #{gcn_forward.1} parent=1 // pred_fallthru
      _
    // Predicated region
    $region26: #{gcn_forward.1} parent=1 // pred_check
      _
    $region27: #{gcn_forward.1} parent=1 // pred_check_branch
      %29 = sbr.rel (0) target = $region29
    $region28: #{gcn_forward.1} parent=1 // pred_region
      _
    $region29: #{gcn_forward.1} parent=1 // pred_fallthru
      _
    // Predicated region
    $region30: #{gcn_forward.1} parent=1 // pred_check
      _
    $region31: #{gcn_forward.1} parent=1 // pred_check_branch
      %31 = sbr.rel (0) target = $region33
    $region32: #{gcn_forward.1} parent=1 // pred_region
      _
    $region33: #{gcn_forward.1} parent=1 // pred_fallthru
      _
    // Predicated region
    $region34: #{gcn_forward.1} parent=1 // pred_check
      _
    $region35: #{gcn_forward.1} parent=1 // pred_check_branch
      %33 = sbr.rel (0) target = $region37
    $region36: #{gcn_forward.1} parent=1 // pred_region
      _
    $region37: #{gcn_forward.1} parent=1 // pred_fallthru
      _
    // Predicated region
    $region38: #{gcn_forward.1} parent=1 // pred_check
      _
    $region39: #{gcn_forward.1} parent=1 // pred_check_branch
      %35 = sbr.rel (0) target = $region41
    $region40: #{gcn_forward.1} parent=1 // pred_region
      _
    $region41: #{gcn_forward.1} parent=1 // pred_fallthru
      _
    %v37 = vld [vmem:[%s0] sm:$0xff]
    %v38 = vld [vmem:[%s0 + $0x8] sm:$0xff]
    %v39 = vld [vmem:[%s0 + $0x10] sm:$0xff]
    %v40 = vld [vmem:[%s0 + $0x18] sm:$0xff]
    %v41 = vld [vmem:[%s0 + $0x20] sm:$0xff]
    %v42 = vld [vmem:[%s0 + $0x28] sm:$0xff]
    %v43 = vld [vmem:[%s0 + $0x30] sm:$0xff]
    %v44 = vld [vmem:[%s0 + $0x38] sm:$0xff]
    %v45 = vld [vmem:[%s0 + $0x40] sm:$0xff]
    %v46 = vld [vmem:[%s0 + $0x48] sm:$0xff]
    %v47 = vld [vmem:[%s0 + $0x50] sm:$0xff]
    %v48 = vld [vmem:[%s0 + $0x58] sm:$0xff]
    %v49 = vld [vmem:[%s0 + $0x60] sm:$0xff]
    %v50 = vld [vmem:[%s0 + $0x68] sm:$0xff]
    %v51 = vld [vmem:[%s0 + $0x70] sm:$0xff]
    %v52 = vld [vmem:[%s0 + $0x78] sm:$0xff]
    %v53 = vld [vmem:[%s0 + $0x80] sm:$0xff]
    %v54 = vld [vmem:[%s0 + $0x88] sm:$0xff]
    %v55 = vld [vmem:[%s0 + $0x90] sm:$0xff]
    %v56 = vld [vmem:[%s0 + $0x98] sm:$0xff]
    %v57 = vld [vmem:[%s0 + $0xa0] sm:$0xff]
    %v58 = vld [vmem:[%s0 + $0xa8] sm:$0xff]
    %v59 = vld [vmem:[%s0 + $0xb0] sm:$0xff]
    %v60 = vld [vmem:[%s0 + $0xb8] sm:$0xff]
    %v61 = vld [vmem:[%s0 + $0xc0] sm:$0xff]
    %v62 = vld [vmem:[%s0 + $0xc8] sm:$0xff]
    %v63 = vld [vmem:[%s0 + $0xd0] sm:$0xff]
    %v64 = vld [vmem:[%s0 + $0xd8] sm:$0xff]
    %v65 = vld [vmem:[%s0 + $0xe0] sm:$0xff]
    %v66 = vld [vmem:[%s0 + $0xe8] sm:$0xff]
    %v67 = vld [vmem:[%s0 + $0xf0] sm:$0xff]
    %v68 = vld [vmem:[%s0 + $0xf8] sm:$0xff]
    %v69 = vld [vmem:[%s1] sm:$0xf]
    %v70 = vld [vmem:[%s1 + $0x4] sm:$0xf]
    %v71 = vld [vmem:[%s1 + $0x8] sm:$0xf]
    %v72 = vld [vmem:[%s1 + $0xc] sm:$0xf]
    %v73 = vld [vmem:[%s1 + $0x10] sm:$0xf]
    %v74 = vld [vmem:[%s1 + $0x14] sm:$0xf]
    %v75 = vld [vmem:[%s1 + $0x18] sm:$0xf]
    %v76 = vld [vmem:[%s1 + $0x1c] sm:$0xf]
    %v77 = vld [vmem:[%s1 + $0x20] sm:$0xf]
    %v78 = vld [vmem:[%s1 + $0x24] sm:$0xf]
    %v79 = vld [vmem:[%s1 + $0x28] sm:$0xf]
    %v80 = vld [vmem:[%s1 + $0x2c] sm:$0xf]
    %v81 = vld [vmem:[%s1 + $0x30] sm:$0xf]
    %v82 = vld [vmem:[%s1 + $0x34] sm:$0xf]
    %v83 = vld [vmem:[%s1 + $0x38] sm:$0xf]
    %v84 = vld [vmem:[%s1 + $0x3c] sm:$0xf]
    %v85 = vld [vmem:[%s1 + $0x40] sm:$0xf]
    %v86 = vld [vmem:[%s1 + $0x44] sm:$0xf]
    %v87 = vld [vmem:[%s1 + $0x48] sm:$0xf]
    %v88 = vld [vmem:[%s1 + $0x4c] sm:$0xf]
    %v89 = vld [vmem:[%s1 + $0x50] sm:$0xf]
    %v90 = vld [vmem:[%s1 + $0x54] sm:$0xf]
    %v91 = vld [vmem:[%s1 + $0x58] sm:$0xf]
    %v92 = vld [vmem:[%s1 + $0x5c] sm:$0xf]
    %v93 = vld [vmem:[%s1 + $0x60] sm:$0xf]
    %v94 = vld [vmem:[%s1 + $0x64] sm:$0xf]
    %v95 = vld [vmem:[%s1 + $0x68] sm:$0xf]
    %v96 = vld [vmem:[%s1 + $0x6c] sm:$0xf]
    %v97 = vld [vmem:[%s1 + $0x70] sm:$0xf]
    %v98 = vld [vmem:[%s1 + $0x74] sm:$0xf]
    %v99 = vld [vmem:[%s1 + $0x78] sm:$0xf]
    %v100 = vld [vmem:[%s1 + $0x7c] sm:$0xf]
    %v101 = vld [vmem:[%s2] sm:$0xf]
    %v102 = vld [vmem:[%s2 + $0x4] sm:$0xf]
    %v103 = vld [vmem:[%s2 + $0x8] sm:$0xf]
    %v104 = vld [vmem:[%s2 + $0xc] sm:$0xf]
    %v105 = vld [vmem:[%s2 + $0x10] sm:$0xf]
    %v106 = vld [vmem:[%s2 + $0x14] sm:$0xf]
    %v107 = vld [vmem:[%s2 + $0x18] sm:$0xf]
    %v108 = vld [vmem:[%s2 + $0x1c] sm:$0xf]
    %v109 = vld [vmem:[%s2 + $0x20] sm:$0xf]
    %v110 = vld [vmem:[%s2 + $0x24] sm:$0xf]
    %v111 = vld [vmem:[%s2 + $0x28] sm:$0xf]
    %v112 = vld [vmem:[%s2 + $0x2c] sm:$0xf]
    %v113 = vld [vmem:[%s2 + $0x30] sm:$0xf]
    %v114 = vld [vmem:[%s2 + $0x34] sm:$0xf]
    %v115 = vld [vmem:[%s2 + $0x38] sm:$0xf]
    %v116 = vld [vmem:[%s2 + $0x3c] sm:$0xf]
    %v149 = vunpack.c.l.b16 %v69
    %v150 = vunpack.c.l.b16 %v70
    %v151 = vunpack.c.l.b16 %v71
    %v152 = vunpack.c.l.b16 %v72
    %v153 = vunpack.c.l.b16 %v73
    %v154 = vunpack.c.l.b16 %v74
    %v155 = vunpack.c.l.b16 %v75
    %v156 = vunpack.c.l.b16 %v76
    %v157 = vunpack.c.l.b16 %v77
    %v158 = vunpack.c.l.b16 %v78
    %v159 = vunpack.c.l.b16 %v79
    %v160 = vunpack.c.l.b16 %v80
    %v161 = vunpack.c.l.b16 %v81
    %v162 = vunpack.c.l.b16 %v82
    %v163 = vunpack.c.l.b16 %v83
    %v164 = vunpack.c.l.b16 %v84
    %v165 = vunpack.c.l.b16 %v85
    %v166 = vunpack.c.l.b16 %v86
    %v167 = vunpack.c.l.b16 %v87
    %v168 = vunpack.c.l.b16 %v88
    %v169 = vunpack.c.l.b16 %v89
    %v170 = vunpack.c.l.b16 %v90
    %v171 = vunpack.c.l.b16 %v91
    %v172 = vunpack.c.l.b16 %v92
    %v173 = vunpack.c.l.b16 %v93
    %v174 = vunpack.c.l.b16 %v94
    %v175 = vunpack.c.l.b16 %v95
    %v176 = vunpack.c.l.b16 %v96
    %v177 = vunpack.c.l.b16 %v97
    %v178 = vunpack.c.l.b16 %v98
    %v179 = vunpack.c.l.b16 %v99
    %v180 = vunpack.c.l.b16 %v100
    %v181 = vpack.c.b16 %v150, %v149
    %v182 = vpack.c.b16 %v152, %v151
    %v183 = vpack.c.b16 %v154, %v153
    %v184 = vpack.c.b16 %v156, %v155
    %v185 = vpack.c.b16 %v158, %v157
    %v186 = vpack.c.b16 %v160, %v159
    %v187 = vpack.c.b16 %v162, %v161
    %v188 = vpack.c.b16 %v164, %v163
    %v189 = vpack.c.b16 %v166, %v165
    %v190 = vpack.c.b16 %v168, %v167
    %v191 = vpack.c.b16 %v170, %v169
    %v192 = vpack.c.b16 %v172, %v171
    %v193 = vpack.c.b16 %v174, %v173
    %v194 = vpack.c.b16 %v176, %v175
    %v195 = vpack.c.b16 %v178, %v177
    %v196 = vpack.c.b16 %v180, %v179
    %v229 = vunpack.c.l.b16 %v101
    %v230 = vunpack.c.l.b16 %v102
    %v231 = vunpack.c.l.b16 %v103
    %v232 = vunpack.c.l.b16 %v104
    %v233 = vunpack.c.l.b16 %v105
    %v234 = vunpack.c.l.b16 %v106
    %v235 = vunpack.c.l.b16 %v107
    %v236 = vunpack.c.l.b16 %v108
    %v237 = vunpack.c.l.b16 %v109
    %v238 = vunpack.c.l.b16 %v110
    %v239 = vunpack.c.l.b16 %v111
    %v240 = vunpack.c.l.b16 %v112
    %v241 = vunpack.c.l.b16 %v113
    %v242 = vunpack.c.l.b16 %v114
    %v243 = vunpack.c.l.b16 %v115
    %v244 = vunpack.c.l.b16 %v116
    %v245 = vpack.c.b16 %v230, %v229
    %v246 = vpack.c.b16 %v232, %v231
    %v247 = vpack.c.b16 %v234, %v233
    %v248 = vpack.c.b16 %v236, %v235
    %v249 = vpack.c.b16 %v238, %v237
    %v250 = vpack.c.b16 %v240, %v239
    %v251 = vpack.c.b16 %v242, %v241
    %v252 = vpack.c.b16 %v244, %v243
    %261 = vmatprep.subr.bf16.mxu0 0
    %262 = vmatpush1.bf16.msra.mxu0 %v245
    %263 = vmatprep.subr.bf16.mxu0 0
    %264 = vmatpush1.bf16.msra.mxu0 %v246
    %265 = vmatprep.subr.bf16.mxu0 0
    %266 = vmatpush1.bf16.msra.mxu0 %v247
    %267 = vmatprep.subr.bf16.mxu0 0
    %268 = vmatpush1.bf16.msra.mxu0 %v248
    %269 = vmatprep.subr.bf16.mxu0 0
    %270 = vmatpush1.bf16.msra.mxu0 %v249
    %271 = vmatprep.subr.bf16.mxu0 0
    %272 = vmatpush1.bf16.msra.mxu0 %v250
    %273 = vmatprep.subr.bf16.mxu0 0
    %274 = vmatpush1.bf16.msra.mxu0 %v251
    %275 = vmatprep.subr.bf16.mxu0 0
    %276 = vmatpush1.bf16.msra.mxu0 %v252
    %277 = vmatprep.subr.bf16.mxu0 0
    %278 = vmatpush1.bf16.msra.mxu0 0
    %279 = vmatprep.subr.bf16.mxu0 0
    %280 = vmatpush1.bf16.msra.mxu0 0
    %281 = vmatprep.subr.bf16.mxu0 0
    %282 = vmatpush1.bf16.msra.mxu0 0
    %283 = vmatprep.subr.bf16.mxu0 0
    %284 = vmatpush1.bf16.msra.mxu0 0
    %285 = vmatprep.subr.bf16.mxu0 0
    %286 = vmatpush1.bf16.msra.mxu0 0
    %287 = vmatprep.subr.bf16.mxu0 0
    %288 = vmatpush1.bf16.msra.mxu0 0
    %289 = vmatprep.subr.bf16.mxu0 0
    %290 = vmatpush1.bf16.msra.mxu0 0
    %291 = vmatprep.subr.bf16.mxu0 0
    %292 = vmatpush1.bf16.msra.mxu0 0
    %293 = vmatprep.mubr.bf16.mxu0 0
    %294 = vmatmul.mubr.bf16.gmra.mrb[0].mxu0 %v181
    %v295 = vpop.f32.mrb[0].mxu0
    %v296 = vadd.f32 0.0, %v295
    %v297 = vpop.f32.mrb[0].mxu0
    %v298 = vpop.f32.mrb[0].mxu0
    %v299 = vadd.f32 0.0, %v298
    %v300 = vpop.f32.mrb[0].mxu0
    %301 = vmatprep.mubr.bf16.mxu0 0
    %302 = vmatmul.mubr.bf16.gmra.mrb[0].mxu0 %v182
    %v303 = vpop.f32.mrb[0].mxu0
    %v304 = vadd.f32 0.0, %v303
    %v305 = vpop.f32.mrb[0].mxu0
    %v306 = vpop.f32.mrb[0].mxu0
    %v307 = vadd.f32 0.0, %v306
    %v308 = vpop.f32.mrb[0].mxu0
    %309 = vmatprep.mubr.bf16.mxu0 0
    %310 = vmatmul.mubr.bf16.gmra.mrb[0].mxu0 %v183
    %v311 = vpop.f32.mrb[0].mxu0
    %v312 = vadd.f32 0.0, %v311
    %v313 = vpop.f32.mrb[0].mxu0
    %v314 = vpop.f32.mrb[0].mxu0
    %v315 = vadd.f32 0.0, %v314
    %v316 = vpop.f32.mrb[0].mxu0
    %317 = vmatprep.mubr.bf16.mxu0 0
    %318 = vmatmul.mubr.bf16.gmra.mrb[0].mxu0 %v184
    %v319 = vpop.f32.mrb[0].mxu0
    %v320 = vadd.f32 0.0, %v319
    %v321 = vpop.f32.mrb[0].mxu0
    %v322 = vpop.f32.mrb[0].mxu0
    %v323 = vadd.f32 0.0, %v322
    %v324 = vpop.f32.mrb[0].mxu0
    %325 = vmatprep.mubr.bf16.mxu0 0
    %326 = vmatmul.mubr.bf16.gmra.mrb[0].mxu0 %v185
    %v327 = vpop.f32.mrb[0].mxu0
    %v328 = vadd.f32 0.0, %v327
    %v329 = vpop.f32.mrb[0].mxu0
    %v330 = vpop.f32.mrb[0].mxu0
    %v331 = vadd.f32 0.0, %v330
    %v332 = vpop.f32.mrb[0].mxu0
    %333 = vmatprep.mubr.bf16.mxu0 0
    %334 = vmatmul.mubr.bf16.gmra.mrb[0].mxu0 %v186
    %v335 = vpop.f32.mrb[0].mxu0
    %v336 = vadd.f32 0.0, %v335
    %v337 = vpop.f32.mrb[0].mxu0
    %v338 = vpop.f32.mrb[0].mxu0
    %v339 = vadd.f32 0.0, %v338
    %v340 = vpop.f32.mrb[0].mxu0
    %341 = vmatprep.mubr.bf16.mxu0 0
    %342 = vmatmul.mubr.bf16.gmra.mrb[0].mxu0 %v187
    %v343 = vpop.f32.mrb[0].mxu0
    %v344 = vadd.f32 0.0, %v343
    %v345 = vpop.f32.mrb[0].mxu0
    %v346 = vpop.f32.mrb[0].mxu0
    %v347 = vadd.f32 0.0, %v346
    %v348 = vpop.f32.mrb[0].mxu0
    %349 = vmatprep.mubr.bf16.mxu0 0
    %350 = vmatmul.mubr.bf16.gmra.mrb[0].mxu0 %v188
    %v351 = vpop.f32.mrb[0].mxu0
    %v352 = vadd.f32 0.0, %v351
    %v353 = vpop.f32.mrb[0].mxu0
    %v354 = vpop.f32.mrb[0].mxu0
    %v355 = vadd.f32 0.0, %v354
    %v356 = vpop.f32.mrb[0].mxu0
    %357 = vmatprep.mubr.bf16.mxu0 0
    %358 = vmatmul.mubr.bf16.gmra.mrb[0].mxu0 %v189
    %v359 = vpop.f32.mrb[0].mxu0
    %v360 = vadd.f32 0.0, %v359
    %v361 = vpop.f32.mrb[0].mxu0
    %v362 = vpop.f32.mrb[0].mxu0
    %v363 = vadd.f32 0.0, %v362
    %v364 = vpop.f32.mrb[0].mxu0
    %365 = vmatprep.mubr.bf16.mxu0 0
    %366 = vmatmul.mubr.bf16.gmra.mrb[0].mxu0 %v190
    %v367 = vpop.f32.mrb[0].mxu0
    %v368 = vadd.f32 0.0, %v367
    %v369 = vpop.f32.mrb[0].mxu0
    %v370 = vpop.f32.mrb[0].mxu0
    %v371 = vadd.f32 0.0, %v370
    %v372 = vpop.f32.mrb[0].mxu0
    %373 = vmatprep.mubr.bf16.mxu0 0
    %374 = vmatmul.mubr.bf16.gmra.mrb[0].mxu0 %v191
    %v375 = vpop.f32.mrb[0].mxu0
    %v376 = vadd.f32 0.0, %v375
    %v377 = vpop.f32.mrb[0].mxu0
    %v378 = vpop.f32.mrb[0].mxu0
    %v379 = vadd.f32 0.0, %v378
    %v380 = vpop.f32.mrb[0].mxu0
    %381 = vmatprep.mubr.bf16.mxu0 0
    %382 = vmatmul.mubr.bf16.gmra.mrb[0].mxu0 %v192
    %v383 = vpop.f32.mrb[0].mxu0
    %v384 = vadd.f32 0.0, %v383
    %v385 = vpop.f32.mrb[0].mxu0
    %v386 = vpop.f32.mrb[0].mxu0
    %v387 = vadd.f32 0.0, %v386
    %v388 = vpop.f32.mrb[0].mxu0
    %389 = vmatprep.mubr.bf16.mxu0 0
    %390 = vmatmul.mubr.bf16.gmra.mrb[0].mxu0 %v193
    %v391 = vpop.f32.mrb[0].mxu0
    %v392 = vadd.f32 0.0, %v391
    %v393 = vpop.f32.mrb[0].mxu0
    %v394 = vpop.f32.mrb[0].mxu0
    %v395 = vadd.f32 0.0, %v394
    %v396 = vpop.f32.mrb[0].mxu0
    %397 = vmatprep.mubr.bf16.mxu0 0
    %398 = vmatmul.mubr.bf16.gmra.mrb[0].mxu0 %v194
    %v399 = vpop.f32.mrb[0].mxu0
    %v400 = vadd.f32 0.0, %v399
    %v401 = vpop.f32.mrb[0].mxu0
    %v402 = vpop.f32.mrb[0].mxu0
    %v403 = vadd.f32 0.0, %v402
    %v404 = vpop.f32.mrb[0].mxu0
    %405 = vmatprep.mubr.bf16.mxu0 0
    %406 = vmatmul.mubr.bf16.gmra.mrb[0].mxu0 %v195
    %v407 = vpop.f32.mrb[0].mxu0
    %v408 = vadd.f32 0.0, %v407
    %v409 = vpop.f32.mrb[0].mxu0
    %v410 = vpop.f32.mrb[0].mxu0
    %v411 = vadd.f32 0.0, %v410
    %v412 = vpop.f32.mrb[0].mxu0
    %413 = vmatprep.mubr.bf16.mxu0 0
    %414 = vmatmul.mubr.bf16.gmra.mrb[0].mxu0 %v196
    %v415 = vpop.f32.mrb[0].mxu0
    %v416 = vadd.f32 0.0, %v415
    %v417 = vpop.f32.mrb[0].mxu0
    %v418 = vpop.f32.mrb[0].mxu0
    %v419 = vadd.f32 0.0, %v418
    %v420 = vpop.f32.mrb[0].mxu0
    %421 = vdwg.mxu0
    %v422 = vpack.c.bf16 %v299, %v296
    %v423 = vpack.c.bf16 %v307, %v304
    %v424 = vpack.c.bf16 %v315, %v312
    %v425 = vpack.c.bf16 %v323, %v320
    %v426 = vpack.c.bf16 %v331, %v328
    %v427 = vpack.c.bf16 %v339, %v336
    %v428 = vpack.c.bf16 %v347, %v344
    %v429 = vpack.c.bf16 %v355, %v352
    %v430 = vpack.c.bf16 %v363, %v360
    %v431 = vpack.c.bf16 %v371, %v368
    %v432 = vpack.c.bf16 %v379, %v376
    %v433 = vpack.c.bf16 %v387, %v384
    %v434 = vpack.c.bf16 %v395, %v392
    %v435 = vpack.c.bf16 %v403, %v400
    %v436 = vpack.c.bf16 %v411, %v408
    %v437 = vpack.c.bf16 %v419, %v416
    %v438 = vld [vmem:[%s3] sm:$0x1]
    %v440 = vlaneseq
    %v441 = vshrl.u32 %v440, 7
    %v442 = vsub.s32 0, %v441
    %v443 = vrot.slane %v438, %v442
    %v477 = vunpack.c.l.b16 %v37
    %v478 = vunpack.c.h.b16 %v37
    %v479 = vunpack.c.l.b16 %v38
    %v480 = vunpack.c.h.b16 %v38
    %v481 = vunpack.c.l.b16 %v39
    %v482 = vunpack.c.h.b16 %v39
    %v483 = vunpack.c.l.b16 %v40
    %v484 = vunpack.c.h.b16 %v40
    %v485 = vunpack.c.l.b16 %v41
    %v486 = vunpack.c.h.b16 %v41
    %v487 = vunpack.c.l.b16 %v42
    %v488 = vunpack.c.h.b16 %v42
    %v489 = vunpack.c.l.b16 %v43
    %v490 = vunpack.c.h.b16 %v43
    %v491 = vunpack.c.l.b16 %v44
    %v492 = vunpack.c.h.b16 %v44
    %v493 = vunpack.c.l.b16 %v45
    %v494 = vunpack.c.h.b16 %v45
    %v495 = vunpack.c.l.b16 %v46
    %v496 = vunpack.c.h.b16 %v46
    %v497 = vunpack.c.l.b16 %v47
    %v498 = vunpack.c.h.b16 %v47
    %v499 = vunpack.c.l.b16 %v48
    %v500 = vunpack.c.h.b16 %v48
    %v501 = vunpack.c.l.b16 %v49
    %v502 = vunpack.c.h.b16 %v49
    %v503 = vunpack.c.l.b16 %v50
    %v504 = vunpack.c.h.b16 %v50
    %v505 = vunpack.c.l.b16 %v51
    %v506 = vunpack.c.h.b16 %v51
    %v507 = vunpack.c.l.b16 %v52
    %v508 = vunpack.c.h.b16 %v52
    %v509 = vunpack.c.l.b16 %v53
    %v510 = vunpack.c.h.b16 %v53
    %v511 = vunpack.c.l.b16 %v54
    %v512 = vunpack.c.h.b16 %v54
    %v513 = vunpack.c.l.b16 %v55
    %v514 = vunpack.c.h.b16 %v55
    %v515 = vunpack.c.l.b16 %v56
    %v516 = vunpack.c.h.b16 %v56
    %v517 = vunpack.c.l.b16 %v57
    %v518 = vunpack.c.h.b16 %v57
    %v519 = vunpack.c.l.b16 %v58
    %v520 = vunpack.c.h.b16 %v58
    %v521 = vunpack.c.l.b16 %v59
    %v522 = vunpack.c.h.b16 %v59
    %v523 = vunpack.c.l.b16 %v60
    %v524 = vunpack.c.h.b16 %v60
    %v525 = vunpack.c.l.b16 %v61
    %v526 = vunpack.c.h.b16 %v61
    %v527 = vunpack.c.l.b16 %v62
    %v528 = vunpack.c.h.b16 %v62
    %v529 = vunpack.c.l.b16 %v63
    %v530 = vunpack.c.h.b16 %v63
    %v531 = vunpack.c.l.b16 %v64
    %v532 = vunpack.c.h.b16 %v64
    %v533 = vunpack.c.l.b16 %v65
    %v534 = vunpack.c.h.b16 %v65
    %v535 = vunpack.c.l.b16 %v66
    %v536 = vunpack.c.h.b16 %v66
    %v537 = vunpack.c.l.b16 %v67
    %v538 = vunpack.c.h.b16 %v67
    %v539 = vunpack.c.l.b16 %v68
    %v540 = vunpack.c.h.b16 %v68
    %v541 = vpack.c.b16 %v479, %v477
    %v542 = vpack.c.b16 %v480, %v478
    %v543 = vpack.c.b16 %v483, %v481
    %v544 = vpack.c.b16 %v484, %v482
    %v545 = vpack.c.b16 %v487, %v485
    %v546 = vpack.c.b16 %v488, %v486
    %v547 = vpack.c.b16 %v491, %v489
    %v548 = vpack.c.b16 %v492, %v490
    %v549 = vpack.c.b16 %v495, %v493
    %v550 = vpack.c.b16 %v496, %v494
    %v551 = vpack.c.b16 %v499, %v497
    %v552 = vpack.c.b16 %v500, %v498
    %v553 = vpack.c.b16 %v503, %v501
    %v554 = vpack.c.b16 %v504, %v502
    %v555 = vpack.c.b16 %v507, %v505
    %v556 = vpack.c.b16 %v508, %v506
    %v557 = vpack.c.b16 %v511, %v509
    %v558 = vpack.c.b16 %v512, %v510
    %v559 = vpack.c.b16 %v515, %v513
    %v560 = vpack.c.b16 %v516, %v514
    %v561 = vpack.c.b16 %v519, %v517
    %v562 = vpack.c.b16 %v520, %v518
    %v563 = vpack.c.b16 %v523, %v521
    %v564 = vpack.c.b16 %v524, %v522
    %v565 = vpack.c.b16 %v527, %v525
    %v566 = vpack.c.b16 %v528, %v526
    %v567 = vpack.c.b16 %v531, %v529
    %v568 = vpack.c.b16 %v532, %v530
    %v569 = vpack.c.b16 %v535, %v533
    %v570 = vpack.c.b16 %v536, %v534
    %v571 = vpack.c.b16 %v539, %v537
    %v572 = vpack.c.b16 %v540, %v538
    %605 = vmatprep.subr.bf16.mxu0 0
    %606 = vmatpush1.bf16.msra.mxu0 %v422
    %607 = vmatprep.subr.bf16.mxu0 0
    %608 = vmatpush1.bf16.msra.mxu0 %v423
    %609 = vmatprep.subr.bf16.mxu0 0
    %610 = vmatpush1.bf16.msra.mxu0 %v424
    %611 = vmatprep.subr.bf16.mxu0 0
    %612 = vmatpush1.bf16.msra.mxu0 %v425
    %613 = vmatprep.subr.bf16.mxu0 0
    %614 = vmatpush1.bf16.msra.mxu0 %v426
    %615 = vmatprep.subr.bf16.mxu0 0
    %616 = vmatpush1.bf16.msra.mxu0 %v427
    %617 = vmatprep.subr.bf16.mxu0 0
    %618 = vmatpush1.bf16.msra.mxu0 %v428
    %619 = vmatprep.subr.bf16.mxu0 0
    %620 = vmatpush1.bf16.msra.mxu0 %v429
    %621 = vmatprep.subr.bf16.mxu0 0
    %622 = vmatpush1.bf16.msra.mxu0 %v430
    %623 = vmatprep.subr.bf16.mxu0 0
    %624 = vmatpush1.bf16.msra.mxu0 %v431
    %625 = vmatprep.subr.bf16.mxu0 0
    %626 = vmatpush1.bf16.msra.mxu0 %v432
    %627 = vmatprep.subr.bf16.mxu0 0
    %628 = vmatpush1.bf16.msra.mxu0 %v433
    %629 = vmatprep.subr.bf16.mxu0 0
    %630 = vmatpush1.bf16.msra.mxu0 %v434
    %631 = vmatprep.subr.bf16.mxu0 0
    %632 = vmatpush1.bf16.msra.mxu0 %v435
    %633 = vmatprep.subr.bf16.mxu0 0
    %634 = vmatpush1.bf16.msra.mxu0 %v436
    %635 = vmatprep.subr.bf16.mxu0 0
    %636 = vmatpush1.bf16.msra.mxu0 %v437
    %637 = vmatprep.mubr.bf16.mxu0 %v542
    %638 = vmatmul.mubr.bf16.gmra.mrb[0].mxu0 %v541
    %v639 = vpop.f32.mrb[0].mxu0
    %v640 = vadd.f32 %v443, %v639
    %v641 = vpop.f32.mrb[0].mxu0
    %v642 = vpop.f32.mrb[0].mxu0
    %v643 = vadd.f32 %v443, %v642
    %v644 = vpop.f32.mrb[0].mxu0
    %645 = vmatprep.mubr.bf16.mxu0 %v544
    %646 = vmatmul.mubr.bf16.gmra.mrb[0].mxu0 %v543
    %v647 = vpop.f32.mrb[0].mxu0
    %v648 = vadd.f32 %v443, %v647
    %v649 = vpop.f32.mrb[0].mxu0
    %v650 = vpop.f32.mrb[0].mxu0
    %v651 = vadd.f32 %v443, %v650
    %v652 = vpop.f32.mrb[0].mxu0
    %653 = vmatprep.mubr.bf16.mxu0 %v546
    %654 = vmatmul.mubr.bf16.gmra.mrb[0].mxu0 %v545
    %v655 = vpop.f32.mrb[0].mxu0
    %v656 = vadd.f32 %v443, %v655
    %v657 = vpop.f32.mrb[0].mxu0
    %v658 = vpop.f32.mrb[0].mxu0
    %v659 = vadd.f32 %v443, %v658
    %v660 = vpop.f32.mrb[0].mxu0
    %661 = vmatprep.mubr.bf16.mxu0 %v548
    %662 = vmatmul.mubr.bf16.gmra.mrb[0].mxu0 %v547
    %v663 = vpop.f32.mrb[0].mxu0
    %v664 = vadd.f32 %v443, %v663
    %v665 = vpop.f32.mrb[0].mxu0
    %v666 = vpop.f32.mrb[0].mxu0
    %v667 = vadd.f32 %v443, %v666
    %v668 = vpop.f32.mrb[0].mxu0
    %669 = vmatprep.mubr.bf16.mxu0 %v550
    %670 = vmatmul.mubr.bf16.gmra.mrb[0].mxu0 %v549
    %v671 = vpop.f32.mrb[0].mxu0
    %v672 = vadd.f32 %v443, %v671
    %v673 = vpop.f32.mrb[0].mxu0
    %v674 = vpop.f32.mrb[0].mxu0
    %v675 = vadd.f32 %v443, %v674
    %v676 = vpop.f32.mrb[0].mxu0
    %677 = vmatprep.mubr.bf16.mxu0 %v552
    %678 = vmatmul.mubr.bf16.gmra.mrb[0].mxu0 %v551
    %v679 = vpop.f32.mrb[0].mxu0
    %v680 = vadd.f32 %v443, %v679
    %v681 = vpop.f32.mrb[0].mxu0
    %v682 = vpop.f32.mrb[0].mxu0
    %v683 = vadd.f32 %v443, %v682
    %v684 = vpop.f32.mrb[0].mxu0
    %685 = vmatprep.mubr.bf16.mxu0 %v554
    %686 = vmatmul.mubr.bf16.gmra.mrb[0].mxu0 %v553
    %v687 = vpop.f32.mrb[0].mxu0
    %v688 = vadd.f32 %v443, %v687
    %v689 = vpop.f32.mrb[0].mxu0
    %v690 = vpop.f32.mrb[0].mxu0
    %v691 = vadd.f32 %v443, %v690
    %v692 = vpop.f32.mrb[0].mxu0
    %693 = vmatprep.mubr.bf16.mxu0 %v556
    %694 = vmatmul.mubr.bf16.gmra.mrb[0].mxu0 %v555
    %v695 = vpop.f32.mrb[0].mxu0
    %v696 = vadd.f32 %v443, %v695
    %v697 = vpop.f32.mrb[0].mxu0
    %v698 = vpop.f32.mrb[0].mxu0
    %v699 = vadd.f32 %v443, %v698
    %v700 = vpop.f32.mrb[0].mxu0
    %701 = vmatprep.mubr.bf16.mxu0 %v558
    %702 = vmatmul.mubr.bf16.gmra.mrb[0].mxu0 %v557
    %v703 = vpop.f32.mrb[0].mxu0
    %v704 = vadd.f32 %v443, %v703
    %v705 = vpop.f32.mrb[0].mxu0
    %v706 = vpop.f32.mrb[0].mxu0
    %v707 = vadd.f32 %v443, %v706
    %v708 = vpop.f32.mrb[0].mxu0
    %709 = vmatprep.mubr.bf16.mxu0 %v560
    %710 = vmatmul.mubr.bf16.gmra.mrb[0].mxu0 %v559
    %v711 = vpop.f32.mrb[0].mxu0
    %v712 = vadd.f32 %v443, %v711
    %v713 = vpop.f32.mrb[0].mxu0
    %v714 = vpop.f32.mrb[0].mxu0
    %v715 = vadd.f32 %v443, %v714
    %v716 = vpop.f32.mrb[0].mxu0
    %717 = vmatprep.mubr.bf16.mxu0 %v562
    %718 = vmatmul.mubr.bf16.gmra.mrb[0].mxu0 %v561
    %v719 = vpop.f32.mrb[0].mxu0
    %v720 = vadd.f32 %v443, %v719
    %v721 = vpop.f32.mrb[0].mxu0
    %v722 = vpop.f32.mrb[0].mxu0
    %v723 = vadd.f32 %v443, %v722
    %v724 = vpop.f32.mrb[0].mxu0
    %725 = vmatprep.mubr.bf16.mxu0 %v564
    %726 = vmatmul.mubr.bf16.gmra.mrb[0].mxu0 %v563
    %v727 = vpop.f32.mrb[0].mxu0
    %v728 = vadd.f32 %v443, %v727
    %v729 = vpop.f32.mrb[0].mxu0
    %v730 = vpop.f32.mrb[0].mxu0
    %v731 = vadd.f32 %v443, %v730
    %v732 = vpop.f32.mrb[0].mxu0
    %733 = vmatprep.mubr.bf16.mxu0 %v566
    %734 = vmatmul.mubr.bf16.gmra.mrb[0].mxu0 %v565
    %v735 = vpop.f32.mrb[0].mxu0
    %v736 = vadd.f32 %v443, %v735
    %v737 = vpop.f32.mrb[0].mxu0
    %v738 = vpop.f32.mrb[0].mxu0
    %v739 = vadd.f32 %v443, %v738
    %v740 = vpop.f32.mrb[0].mxu0
    %741 = vmatprep.mubr.bf16.mxu0 %v568
    %742 = vmatmul.mubr.bf16.gmra.mrb[0].mxu0 %v567
    %v743 = vpop.f32.mrb[0].mxu0
    %v744 = vadd.f32 %v443, %v743
    %v745 = vpop.f32.mrb[0].mxu0
    %v746 = vpop.f32.mrb[0].mxu0
    %v747 = vadd.f32 %v443, %v746
    %v748 = vpop.f32.mrb[0].mxu0
    %749 = vmatprep.mubr.bf16.mxu0 %v570
    %750 = vmatmul.mubr.bf16.gmra.mrb[0].mxu0 %v569
    %v751 = vpop.f32.mrb[0].mxu0
    %v752 = vadd.f32 %v443, %v751
    %v753 = vpop.f32.mrb[0].mxu0
    %v754 = vpop.f32.mrb[0].mxu0
    %v755 = vadd.f32 %v443, %v754
    %v756 = vpop.f32.mrb[0].mxu0
    %757 = vmatprep.mubr.bf16.mxu0 %v572
    %758 = vmatmul.mubr.bf16.gmra.mrb[0].mxu0 %v571
    %v759 = vpop.f32.mrb[0].mxu0
    %v760 = vadd.f32 %v443, %v759
    %v761 = vpop.f32.mrb[0].mxu0
    %v762 = vpop.f32.mrb[0].mxu0
    %v763 = vadd.f32 %v443, %v762
    %v764 = vpop.f32.mrb[0].mxu0
    %765 = vdwg.mxu0
    %v766 = vmax.f32 %v640, 0.0
    %v767 = vmax.f32 %v643, 0.0
    %v768 = vmax.f32 %v648, 0.0
    %v769 = vmax.f32 %v651, 0.0
    %v770 = vmax.f32 %v656, 0.0
    %v771 = vmax.f32 %v659, 0.0
    %v772 = vmax.f32 %v664, 0.0
    %v773 = vmax.f32 %v667, 0.0
    %v774 = vmax.f32 %v672, 0.0
    %v775 = vmax.f32 %v675, 0.0
    %v776 = vmax.f32 %v680, 0.0
    %v777 = vmax.f32 %v683, 0.0
    %v778 = vmax.f32 %v688, 0.0
    %v779 = vmax.f32 %v691, 0.0
    %v780 = vmax.f32 %v696, 0.0
    %v781 = vmax.f32 %v699, 0.0
    %v782 = vmax.f32 %v704, 0.0
    %v783 = vmax.f32 %v707, 0.0
    %v784 = vmax.f32 %v712, 0.0
    %v785 = vmax.f32 %v715, 0.0
    %v786 = vmax.f32 %v720, 0.0
    %v787 = vmax.f32 %v723, 0.0
    %v788 = vmax.f32 %v728, 0.0
    %v789 = vmax.f32 %v731, 0.0
    %v790 = vmax.f32 %v736, 0.0
    %v791 = vmax.f32 %v739, 0.0
    %v792 = vmax.f32 %v744, 0.0
    %v793 = vmax.f32 %v747, 0.0
    %v794 = vmax.f32 %v752, 0.0
    %v795 = vmax.f32 %v755, 0.0
    %v796 = vmax.f32 %v760, 0.0
    %v797 = vmax.f32 %v763, 0.0
    %v798 = vpack.c.bf16 %v767, %v766
    %v799 = vpack.c.bf16 %v769, %v768
    %v800 = vpack.c.bf16 %v771, %v770
    %v801 = vpack.c.bf16 %v773, %v772
    %v802 = vpack.c.bf16 %v775, %v774
    %v803 = vpack.c.bf16 %v777, %v776
    %v804 = vpack.c.bf16 %v779, %v778
    %v805 = vpack.c.bf16 %v781, %v780
    %v806 = vpack.c.bf16 %v783, %v782
    %v807 = vpack.c.bf16 %v785, %v784
    %v808 = vpack.c.bf16 %v787, %v786
    %v809 = vpack.c.bf16 %v789, %v788
    %v810 = vpack.c.bf16 %v791, %v790
    %v811 = vpack.c.bf16 %v793, %v792
    %v812 = vpack.c.bf16 %v795, %v794
    %v813 = vpack.c.bf16 %v797, %v796
    %v814 = vld [vmem:[%s4] sm:$0xf]
    %v815 = vld [vmem:[%s4 + $0x4] sm:$0xf]
    %v816 = vld [vmem:[%s4 + $0x8] sm:$0xf]
    %v817 = vld [vmem:[%s4 + $0xc] sm:$0xf]
    %v818 = vld [vmem:[%s4 + $0x10] sm:$0xf]
    %v819 = vld [vmem:[%s4 + $0x14] sm:$0xf]
    %v820 = vld [vmem:[%s4 + $0x18] sm:$0xf]
    %v821 = vld [vmem:[%s4 + $0x1c] sm:$0xf]
    %v822 = vld [vmem:[%s4 + $0x20] sm:$0xf]
    %v823 = vld [vmem:[%s4 + $0x24] sm:$0xf]
    %v824 = vld [vmem:[%s4 + $0x28] sm:$0xf]
    %v825 = vld [vmem:[%s4 + $0x2c] sm:$0xf]
    %v826 = vld [vmem:[%s4 + $0x30] sm:$0xf]
    %v827 = vld [vmem:[%s4 + $0x34] sm:$0xf]
    %v828 = vld [vmem:[%s4 + $0x38] sm:$0xf]
    %v829 = vld [vmem:[%s4 + $0x3c] sm:$0xf]
    %v846 = vunpack.c.l.b16 %v814
    %v847 = vunpack.c.l.b16 %v815
    %v848 = vunpack.c.l.b16 %v816
    %v849 = vunpack.c.l.b16 %v817
    %v850 = vunpack.c.l.b16 %v818
    %v851 = vunpack.c.l.b16 %v819
    %v852 = vunpack.c.l.b16 %v820
    %v853 = vunpack.c.l.b16 %v821
    %v854 = vunpack.c.l.b16 %v822
    %v855 = vunpack.c.l.b16 %v823
    %v856 = vunpack.c.l.b16 %v824
    %v857 = vunpack.c.l.b16 %v825
    %v858 = vunpack.c.l.b16 %v826
    %v859 = vunpack.c.l.b16 %v827
    %v860 = vunpack.c.l.b16 %v828
    %v861 = vunpack.c.l.b16 %v829
    %v862 = vpack.c.b16 %v847, %v846
    %v863 = vpack.c.b16 %v849, %v848
    %v864 = vpack.c.b16 %v851, %v850
    %v865 = vpack.c.b16 %v853, %v852
    %v866 = vpack.c.b16 %v855, %v854
    %v867 = vpack.c.b16 %v857, %v856
    %v868 = vpack.c.b16 %v859, %v858
    %v869 = vpack.c.b16 %v861, %v860
    %878 = vmatprep.subr.bf16.mxu0 0
    %879 = vmatpush1.bf16.msra.mxu0 %v862
    %880 = vmatprep.subr.bf16.mxu0 0
    %881 = vmatpush1.bf16.msra.mxu0 %v863
    %882 = vmatprep.subr.bf16.mxu0 0
    %883 = vmatpush1.bf16.msra.mxu0 %v864
    %884 = vmatprep.subr.bf16.mxu0 0
    %885 = vmatpush1.bf16.msra.mxu0 %v865
    %886 = vmatprep.subr.bf16.mxu0 0
    %887 = vmatpush1.bf16.msra.mxu0 %v866
    %888 = vmatprep.subr.bf16.mxu0 0
    %889 = vmatpush1.bf16.msra.mxu0 %v867
    %890 = vmatprep.subr.bf16.mxu0 0
    %891 = vmatpush1.bf16.msra.mxu0 %v868
    %892 = vmatprep.subr.bf16.mxu0 0
    %893 = vmatpush1.bf16.msra.mxu0 %v869
    %894 = vmatprep.subr.bf16.mxu0 0
    %895 = vmatpush1.bf16.msra.mxu0 0
    %896 = vmatprep.subr.bf16.mxu0 0
    %897 = vmatpush1.bf16.msra.mxu0 0
    %898 = vmatprep.subr.bf16.mxu0 0
    %899 = vmatpush1.bf16.msra.mxu0 0
    %900 = vmatprep.subr.bf16.mxu0 0
    %901 = vmatpush1.bf16.msra.mxu0 0
    %902 = vmatprep.subr.bf16.mxu0 0
    %903 = vmatpush1.bf16.msra.mxu0 0
    %904 = vmatprep.subr.bf16.mxu0 0
    %905 = vmatpush1.bf16.msra.mxu0 0
    %906 = vmatprep.subr.bf16.mxu0 0
    %907 = vmatpush1.bf16.msra.mxu0 0
    %908 = vmatprep.subr.bf16.mxu0 0
    %909 = vmatpush1.bf16.msra.mxu0 0
    %910 = vmatprep.mubr.bf16.mxu0 0
    %911 = vmatmul.mubr.bf16.gmra.mrb[0].mxu0 %v798
    %v912 = vpop.f32.mrb[0].mxu0
    %v913 = vadd.f32 0.0, %v912
    %v914 = vpop.f32.mrb[0].mxu0
    %v915 = vpop.f32.mrb[0].mxu0
    %v916 = vadd.f32 0.0, %v915
    %v917 = vpop.f32.mrb[0].mxu0
    %918 = vmatprep.mubr.bf16.mxu0 0
    %919 = vmatmul.mubr.bf16.gmra.mrb[0].mxu0 %v799
    %v920 = vpop.f32.mrb[0].mxu0
    %v921 = vadd.f32 0.0, %v920
    %v922 = vpop.f32.mrb[0].mxu0
    %v923 = vpop.f32.mrb[0].mxu0
    %v924 = vadd.f32 0.0, %v923
    %v925 = vpop.f32.mrb[0].mxu0
    %926 = vmatprep.mubr.bf16.mxu0 0
    %927 = vmatmul.mubr.bf16.gmra.mrb[0].mxu0 %v800
    %v928 = vpop.f32.mrb[0].mxu0
    %v929 = vadd.f32 0.0, %v928
    %v930 = vpop.f32.mrb[0].mxu0
    %v931 = vpop.f32.mrb[0].mxu0
    %v932 = vadd.f32 0.0, %v931
    %v933 = vpop.f32.mrb[0].mxu0
    %934 = vmatprep.mubr.bf16.mxu0 0
    %935 = vmatmul.mubr.bf16.gmra.mrb[0].mxu0 %v801
    %v936 = vpop.f32.mrb[0].mxu0
    %v937 = vadd.f32 0.0, %v936
    %v938 = vpop.f32.mrb[0].mxu0
    %v939 = vpop.f32.mrb[0].mxu0
    %v940 = vadd.f32 0.0, %v939
    %v941 = vpop.f32.mrb[0].mxu0
    %942 = vmatprep.mubr.bf16.mxu0 0
    %943 = vmatmul.mubr.bf16.gmra.mrb[0].mxu0 %v802
    %v944 = vpop.f32.mrb[0].mxu0
    %v945 = vadd.f32 0.0, %v944
    %v946 = vpop.f32.mrb[0].mxu0
    %v947 = vpop.f32.mrb[0].mxu0
    %v948 = vadd.f32 0.0, %v947
    %v949 = vpop.f32.mrb[0].mxu0
    %950 = vmatprep.mubr.bf16.mxu0 0
    %951 = vmatmul.mubr.bf16.gmra.mrb[0].mxu0 %v803
    %v952 = vpop.f32.mrb[0].mxu0
    %v953 = vadd.f32 0.0, %v952
    %v954 = vpop.f32.mrb[0].mxu0
    %v955 = vpop.f32.mrb[0].mxu0
    %v956 = vadd.f32 0.0, %v955
    %v957 = vpop.f32.mrb[0].mxu0
    %958 = vmatprep.mubr.bf16.mxu0 0
    %959 = vmatmul.mubr.bf16.gmra.mrb[0].mxu0 %v804
    %v960 = vpop.f32.mrb[0].mxu0
    %v961 = vadd.f32 0.0, %v960
    %v962 = vpop.f32.mrb[0].mxu0
    %v963 = vpop.f32.mrb[0].mxu0
    %v964 = vadd.f32 0.0, %v963
    %v965 = vpop.f32.mrb[0].mxu0
    %966 = vmatprep.mubr.bf16.mxu0 0
    %967 = vmatmul.mubr.bf16.gmra.mrb[0].mxu0 %v805
    %v968 = vpop.f32.mrb[0].mxu0
    %v969 = vadd.f32 0.0, %v968
    %v970 = vpop.f32.mrb[0].mxu0
    %v971 = vpop.f32.mrb[0].mxu0
    %v972 = vadd.f32 0.0, %v971
    %v973 = vpop.f32.mrb[0].mxu0
    %974 = vmatprep.mubr.bf16.mxu0 0
    %975 = vmatmul.mubr.bf16.gmra.mrb[0].mxu0 %v806
    %v976 = vpop.f32.mrb[0].mxu0
    %v977 = vadd.f32 0.0, %v976
    %v978 = vpop.f32.mrb[0].mxu0
    %v979 = vpop.f32.mrb[0].mxu0
    %v980 = vadd.f32 0.0, %v979
    %v981 = vpop.f32.mrb[0].mxu0
    %982 = vmatprep.mubr.bf16.mxu0 0
    %983 = vmatmul.mubr.bf16.gmra.mrb[0].mxu0 %v807
    %v984 = vpop.f32.mrb[0].mxu0
    %v985 = vadd.f32 0.0, %v984
    %v986 = vpop.f32.mrb[0].mxu0
    %v987 = vpop.f32.mrb[0].mxu0
    %v988 = vadd.f32 0.0, %v987
    %v989 = vpop.f32.mrb[0].mxu0
    %990 = vmatprep.mubr.bf16.mxu0 0
    %991 = vmatmul.mubr.bf16.gmra.mrb[0].mxu0 %v808
    %v992 = vpop.f32.mrb[0].mxu0
    %v993 = vadd.f32 0.0, %v992
    %v994 = vpop.f32.mrb[0].mxu0
    %v995 = vpop.f32.mrb[0].mxu0
    %v996 = vadd.f32 0.0, %v995
    %v997 = vpop.f32.mrb[0].mxu0
    %998 = vmatprep.mubr.bf16.mxu0 0
    %999 = vmatmul.mubr.bf16.gmra.mrb[0].mxu0 %v809
    %v1000 = vpop.f32.mrb[0].mxu0
    %v1001 = vadd.f32 0.0, %v1000
    %v1002 = vpop.f32.mrb[0].mxu0
    %v1003 = vpop.f32.mrb[0].mxu0
    %v1004 = vadd.f32 0.0, %v1003
    %v1005 = vpop.f32.mrb[0].mxu0
    %1006 = vmatprep.mubr.bf16.mxu0 0
    %1007 = vmatmul.mubr.bf16.gmra.mrb[0].mxu0 %v810
    %v1008 = vpop.f32.mrb[0].mxu0
    %v1009 = vadd.f32 0.0, %v1008
    %v1010 = vpop.f32.mrb[0].mxu0
    %v1011 = vpop.f32.mrb[0].mxu0
    %v1012 = vadd.f32 0.0, %v1011
    %v1013 = vpop.f32.mrb[0].mxu0
    %1014 = vmatprep.mubr.bf16.mxu0 0
    %1015 = vmatmul.mubr.bf16.gmra.mrb[0].mxu0 %v811
    %v1016 = vpop.f32.mrb[0].mxu0
    %v1017 = vadd.f32 0.0, %v1016
    %v1018 = vpop.f32.mrb[0].mxu0
    %v1019 = vpop.f32.mrb[0].mxu0
    %v1020 = vadd.f32 0.0, %v1019
    %v1021 = vpop.f32.mrb[0].mxu0
    %1022 = vmatprep.mubr.bf16.mxu0 0
    %1023 = vmatmul.mubr.bf16.gmra.mrb[0].mxu0 %v812
    %v1024 = vpop.f32.mrb[0].mxu0
    %v1025 = vadd.f32 0.0, %v1024
    %v1026 = vpop.f32.mrb[0].mxu0
    %v1027 = vpop.f32.mrb[0].mxu0
    %v1028 = vadd.f32 0.0, %v1027
    %v1029 = vpop.f32.mrb[0].mxu0
    %1030 = vmatprep.mubr.bf16.mxu0 0
    %1031 = vmatmul.mubr.bf16.gmra.mrb[0].mxu0 %v813
    %v1032 = vpop.f32.mrb[0].mxu0
    %v1033 = vadd.f32 0.0, %v1032
    %v1034 = vpop.f32.mrb[0].mxu0
    %v1035 = vpop.f32.mrb[0].mxu0
    %v1036 = vadd.f32 0.0, %v1035
    %v1037 = vpop.f32.mrb[0].mxu0
    %1038 = vdwg.mxu0
    %v1039 = vpack.c.bf16 %v916, %v913
    %v1040 = vpack.c.bf16 %v924, %v921
    %v1041 = vpack.c.bf16 %v932, %v929
    %v1042 = vpack.c.bf16 %v940, %v937
    %v1043 = vpack.c.bf16 %v948, %v945
    %v1044 = vpack.c.bf16 %v956, %v953
    %v1045 = vpack.c.bf16 %v964, %v961
    %v1046 = vpack.c.bf16 %v972, %v969
    %v1047 = vpack.c.bf16 %v980, %v977
    %v1048 = vpack.c.bf16 %v988, %v985
    %v1049 = vpack.c.bf16 %v996, %v993
    %v1050 = vpack.c.bf16 %v1004, %v1001
    %v1051 = vpack.c.bf16 %v1012, %v1009
    %v1052 = vpack.c.bf16 %v1020, %v1017
    %v1053 = vpack.c.bf16 %v1028, %v1025
    %v1054 = vpack.c.bf16 %v1036, %v1033
    %v1055 = vld [vmem:[%s5] sm:$0x1]
    %v1057 = vlaneseq
    %v1058 = vshrl.u32 %v1057, 7
    %v1059 = vsub.s32 0, %v1058
    %v1060 = vrot.slane %v1055, %v1059
    %1062 = vmatprep.subr.bf16.mxu0 0
    %1063 = vmatpush1.bf16.msra.mxu0 %v1039
    %1064 = vmatprep.subr.bf16.mxu0 0
    %1065 = vmatpush1.bf16.msra.mxu0 %v1040
    %1066 = vmatprep.subr.bf16.mxu0 0
    %1067 = vmatpush1.bf16.msra.mxu0 %v1041
    %1068 = vmatprep.subr.bf16.mxu0 0
    %1069 = vmatpush1.bf16.msra.mxu0 %v1042
    %1070 = vmatprep.subr.bf16.mxu0 0
    %1071 = vmatpush1.bf16.msra.mxu0 %v1043
    %1072 = vmatprep.subr.bf16.mxu0 0
    %1073 = vmatpush1.bf16.msra.mxu0 %v1044
    %1074 = vmatprep.subr.bf16.mxu0 0
    %1075 = vmatpush1.bf16.msra.mxu0 %v1045
    %1076 = vmatprep.subr.bf16.mxu0 0
    %1077 = vmatpush1.bf16.msra.mxu0 %v1046
    %1078 = vmatprep.subr.bf16.mxu0 0
    %1079 = vmatpush1.bf16.msra.mxu0 %v1047
    %1080 = vmatprep.subr.bf16.mxu0 0
    %1081 = vmatpush1.bf16.msra.mxu0 %v1048
    %1082 = vmatprep.subr.bf16.mxu0 0
    %1083 = vmatpush1.bf16.msra.mxu0 %v1049
    %1084 = vmatprep.subr.bf16.mxu0 0
    %1085 = vmatpush1.bf16.msra.mxu0 %v1050
    %1086 = vmatprep.subr.bf16.mxu0 0
    %1087 = vmatpush1.bf16.msra.mxu0 %v1051
    %1088 = vmatprep.subr.bf16.mxu0 0
    %1089 = vmatpush1.bf16.msra.mxu0 %v1052
    %1090 = vmatprep.subr.bf16.mxu0 0
    %1091 = vmatpush1.bf16.msra.mxu0 %v1053
    %1092 = vmatprep.subr.bf16.mxu0 0
    %1093 = vmatpush1.bf16.msra.mxu0 %v1054
    %1094 = vmatprep.mubr.bf16.mxu0 %v542
    %1095 = vmatmul.mubr.bf16.gmra.mrb[0].mxu0 %v541
    %v1096 = vpop.f32.mrb[0].mxu0
    %v1097 = vadd.f32 %v1060, %v1096
    %v1098 = vpop.f32.mrb[0].mxu0
    %v1099 = vpop.f32.mrb[0].mxu0
    %v1100 = vadd.f32 %v1060, %v1099
    %v1101 = vpop.f32.mrb[0].mxu0
    %1102 = vmatprep.mubr.bf16.mxu0 %v544
    %1103 = vmatmul.mubr.bf16.gmra.mrb[0].mxu0 %v543
    %v1104 = vpop.f32.mrb[0].mxu0
    %v1105 = vadd.f32 %v1060, %v1104
    %v1106 = vpop.f32.mrb[0].mxu0
    %v1107 = vpop.f32.mrb[0].mxu0
    %v1108 = vadd.f32 %v1060, %v1107
    %v1109 = vpop.f32.mrb[0].mxu0
    %1110 = vmatprep.mubr.bf16.mxu0 %v546
    %1111 = vmatmul.mubr.bf16.gmra.mrb[0].mxu0 %v545
    %v1112 = vpop.f32.mrb[0].mxu0
    %v1113 = vadd.f32 %v1060, %v1112
    %v1114 = vpop.f32.mrb[0].mxu0
    %v1115 = vpop.f32.mrb[0].mxu0
    %v1116 = vadd.f32 %v1060, %v1115
    %v1117 = vpop.f32.mrb[0].mxu0
    %1118 = vmatprep.mubr.bf16.mxu0 %v548
    %1119 = vmatmul.mubr.bf16.gmra.mrb[0].mxu0 %v547
    %v1120 = vpop.f32.mrb[0].mxu0
    %v1121 = vadd.f32 %v1060, %v1120
    %v1122 = vpop.f32.mrb[0].mxu0
    %v1123 = vpop.f32.mrb[0].mxu0
    %v1124 = vadd.f32 %v1060, %v1123
    %v1125 = vpop.f32.mrb[0].mxu0
    %1126 = vmatprep.mubr.bf16.mxu0 %v550
    %1127 = vmatmul.mubr.bf16.gmra.mrb[0].mxu0 %v549
    %v1128 = vpop.f32.mrb[0].mxu0
    %v1129 = vadd.f32 %v1060, %v1128
    %v1130 = vpop.f32.mrb[0].mxu0
    %v1131 = vpop.f32.mrb[0].mxu0
    %v1132 = vadd.f32 %v1060, %v1131
    %v1133 = vpop.f32.mrb[0].mxu0
    %1134 = vmatprep.mubr.bf16.mxu0 %v552
    %1135 = vmatmul.mubr.bf16.gmra.mrb[0].mxu0 %v551
    %v1136 = vpop.f32.mrb[0].mxu0
    %v1137 = vadd.f32 %v1060, %v1136
    %v1138 = vpop.f32.mrb[0].mxu0
    %v1139 = vpop.f32.mrb[0].mxu0
    %v1140 = vadd.f32 %v1060, %v1139
    %v1141 = vpop.f32.mrb[0].mxu0
    %1142 = vmatprep.mubr.bf16.mxu0 %v554
    %1143 = vmatmul.mubr.bf16.gmra.mrb[0].mxu0 %v553
    %v1144 = vpop.f32.mrb[0].mxu0
    %v1145 = vadd.f32 %v1060, %v1144
    %v1146 = vpop.f32.mrb[0].mxu0
    %v1147 = vpop.f32.mrb[0].mxu0
    %v1148 = vadd.f32 %v1060, %v1147
    %v1149 = vpop.f32.mrb[0].mxu0
    %1150 = vmatprep.mubr.bf16.mxu0 %v556
    %1151 = vmatmul.mubr.bf16.gmra.mrb[0].mxu0 %v555
    %v1152 = vpop.f32.mrb[0].mxu0
    %v1153 = vadd.f32 %v1060, %v1152
    %v1154 = vpop.f32.mrb[0].mxu0
    %v1155 = vpop.f32.mrb[0].mxu0
    %v1156 = vadd.f32 %v1060, %v1155
    %v1157 = vpop.f32.mrb[0].mxu0
    %1158 = vmatprep.mubr.bf16.mxu0 %v558
    %1159 = vmatmul.mubr.bf16.gmra.mrb[0].mxu0 %v557
    %v1160 = vpop.f32.mrb[0].mxu0
    %v1161 = vadd.f32 %v1060, %v1160
    %v1162 = vpop.f32.mrb[0].mxu0
    %v1163 = vpop.f32.mrb[0].mxu0
    %v1164 = vadd.f32 %v1060, %v1163
    %v1165 = vpop.f32.mrb[0].mxu0
    %1166 = vmatprep.mubr.bf16.mxu0 %v560
    %1167 = vmatmul.mubr.bf16.gmra.mrb[0].mxu0 %v559
    %v1168 = vpop.f32.mrb[0].mxu0
    %v1169 = vadd.f32 %v1060, %v1168
    %v1170 = vpop.f32.mrb[0].mxu0
    %v1171 = vpop.f32.mrb[0].mxu0
    %v1172 = vadd.f32 %v1060, %v1171
    %v1173 = vpop.f32.mrb[0].mxu0
    %1174 = vmatprep.mubr.bf16.mxu0 %v562
    %1175 = vmatmul.mubr.bf16.gmra.mrb[0].mxu0 %v561
    %v1176 = vpop.f32.mrb[0].mxu0
    %v1177 = vadd.f32 %v1060, %v1176
    %v1178 = vpop.f32.mrb[0].mxu0
    %v1179 = vpop.f32.mrb[0].mxu0
    %v1180 = vadd.f32 %v1060, %v1179
    %v1181 = vpop.f32.mrb[0].mxu0
    %1182 = vmatprep.mubr.bf16.mxu0 %v564
    %1183 = vmatmul.mubr.bf16.gmra.mrb[0].mxu0 %v563
    %v1184 = vpop.f32.mrb[0].mxu0
    %v1185 = vadd.f32 %v1060, %v1184
    %v1186 = vpop.f32.mrb[0].mxu0
    %v1187 = vpop.f32.mrb[0].mxu0
    %v1188 = vadd.f32 %v1060, %v1187
    %v1189 = vpop.f32.mrb[0].mxu0
    %1190 = vmatprep.mubr.bf16.mxu0 %v566
    %1191 = vmatmul.mubr.bf16.gmra.mrb[0].mxu0 %v565
    %v1192 = vpop.f32.mrb[0].mxu0
    %v1193 = vadd.f32 %v1060, %v1192
    %v1194 = vpop.f32.mrb[0].mxu0
    %v1195 = vpop.f32.mrb[0].mxu0
    %v1196 = vadd.f32 %v1060, %v1195
    %v1197 = vpop.f32.mrb[0].mxu0
    %1198 = vmatprep.mubr.bf16.mxu0 %v568
    %1199 = vmatmul.mubr.bf16.gmra.mrb[0].mxu0 %v567
    %v1200 = vpop.f32.mrb[0].mxu0
    %v1201 = vadd.f32 %v1060, %v1200
    %v1202 = vpop.f32.mrb[0].mxu0
    %v1203 = vpop.f32.mrb[0].mxu0
    %v1204 = vadd.f32 %v1060, %v1203
    %v1205 = vpop.f32.mrb[0].mxu0
    %1206 = vmatprep.mubr.bf16.mxu0 %v570
    %1207 = vmatmul.mubr.bf16.gmra.mrb[0].mxu0 %v569
    %v1208 = vpop.f32.mrb[0].mxu0
    %v1209 = vadd.f32 %v1060, %v1208
    %v1210 = vpop.f32.mrb[0].mxu0
    %v1211 = vpop.f32.mrb[0].mxu0
    %v1212 = vadd.f32 %v1060, %v1211
    %v1213 = vpop.f32.mrb[0].mxu0
    %1214 = vmatprep.mubr.bf16.mxu0 %v572
    %1215 = vmatmul.mubr.bf16.gmra.mrb[0].mxu0 %v571
    %v1216 = vpop.f32.mrb[0].mxu0
    %v1217 = vadd.f32 %v1060, %v1216
    %v1218 = vpop.f32.mrb[0].mxu0
    %v1219 = vpop.f32.mrb[0].mxu0
    %v1220 = vadd.f32 %v1060, %v1219
    %v1221 = vpop.f32.mrb[0].mxu0
    %1222 = vdwg.mxu0
    %v1223 = vmax.f32 %v1097, 0.0
    %v1224 = vmax.f32 %v1100, 0.0
    %v1225 = vmax.f32 %v1105, 0.0
    %v1226 = vmax.f32 %v1108, 0.0
    %v1227 = vmax.f32 %v1113, 0.0
    %v1228 = vmax.f32 %v1116, 0.0
    %v1229 = vmax.f32 %v1121, 0.0
    %v1230 = vmax.f32 %v1124, 0.0
    %v1231 = vmax.f32 %v1129, 0.0
    %v1232 = vmax.f32 %v1132, 0.0
    %v1233 = vmax.f32 %v1137, 0.0
    %v1234 = vmax.f32 %v1140, 0.0
    %v1235 = vmax.f32 %v1145, 0.0
    %v1236 = vmax.f32 %v1148, 0.0
    %v1237 = vmax.f32 %v1153, 0.0
    %v1238 = vmax.f32 %v1156, 0.0
    %v1239 = vmax.f32 %v1161, 0.0
    %v1240 = vmax.f32 %v1164, 0.0
    %v1241 = vmax.f32 %v1169, 0.0
    %v1242 = vmax.f32 %v1172, 0.0
    %v1243 = vmax.f32 %v1177, 0.0
    %v1244 = vmax.f32 %v1180, 0.0
    %v1245 = vmax.f32 %v1185, 0.0
    %v1246 = vmax.f32 %v1188, 0.0
    %v1247 = vmax.f32 %v1193, 0.0
    %v1248 = vmax.f32 %v1196, 0.0
    %v1249 = vmax.f32 %v1201, 0.0
    %v1250 = vmax.f32 %v1204, 0.0
    %v1251 = vmax.f32 %v1209, 0.0
    %v1252 = vmax.f32 %v1212, 0.0
    %v1253 = vmax.f32 %v1217, 0.0
    %v1254 = vmax.f32 %v1220, 0.0
    %v1255 = vpack.c.bf16 %v1224, %v1223
    %v1256 = vpack.c.bf16 %v1226, %v1225
    %v1257 = vpack.c.bf16 %v1228, %v1227
    %v1258 = vpack.c.bf16 %v1230, %v1229
    %v1259 = vpack.c.bf16 %v1232, %v1231
    %v1260 = vpack.c.bf16 %v1234, %v1233
    %v1261 = vpack.c.bf16 %v1236, %v1235
    %v1262 = vpack.c.bf16 %v1238, %v1237
    %v1263 = vpack.c.bf16 %v1240, %v1239
    %v1264 = vpack.c.bf16 %v1242, %v1241
    %v1265 = vpack.c.bf16 %v1244, %v1243
    %v1266 = vpack.c.bf16 %v1246, %v1245
    %v1267 = vpack.c.bf16 %v1248, %v1247
    %v1268 = vpack.c.bf16 %v1250, %v1249
    %v1269 = vpack.c.bf16 %v1252, %v1251
    %v1270 = vpack.c.bf16 %v1254, %v1253
    %v1271 = vld [vmem:[%s6] sm:$0xf]
    %v1272 = vld [vmem:[%s6 + $0x4] sm:$0xf]
    %v1273 = vld [vmem:[%s6 + $0x8] sm:$0xf]
    %v1274 = vld [vmem:[%s6 + $0xc] sm:$0xf]
    %v1275 = vld [vmem:[%s6 + $0x10] sm:$0xf]
    %v1276 = vld [vmem:[%s6 + $0x14] sm:$0xf]
    %v1277 = vld [vmem:[%s6 + $0x18] sm:$0xf]
    %v1278 = vld [vmem:[%s6 + $0x1c] sm:$0xf]
    %v1279 = vld [vmem:[%s6 + $0x20] sm:$0xf]
    %v1280 = vld [vmem:[%s6 + $0x24] sm:$0xf]
    %v1281 = vld [vmem:[%s6 + $0x28] sm:$0xf]
    %v1282 = vld [vmem:[%s6 + $0x2c] sm:$0xf]
    %v1283 = vld [vmem:[%s6 + $0x30] sm:$0xf]
    %v1284 = vld [vmem:[%s6 + $0x34] sm:$0xf]
    %v1285 = vld [vmem:[%s6 + $0x38] sm:$0xf]
    %v1286 = vld [vmem:[%s6 + $0x3c] sm:$0xf]
    %v1303 = vunpack.c.l.b16 %v1271
    %v1304 = vunpack.c.l.b16 %v1272
    %v1305 = vunpack.c.l.b16 %v1273
    %v1306 = vunpack.c.l.b16 %v1274
    %v1307 = vunpack.c.l.b16 %v1275
    %v1308 = vunpack.c.l.b16 %v1276
    %v1309 = vunpack.c.l.b16 %v1277
    %v1310 = vunpack.c.l.b16 %v1278
    %v1311 = vunpack.c.l.b16 %v1279
    %v1312 = vunpack.c.l.b16 %v1280
    %v1313 = vunpack.c.l.b16 %v1281
    %v1314 = vunpack.c.l.b16 %v1282
    %v1315 = vunpack.c.l.b16 %v1283
    %v1316 = vunpack.c.l.b16 %v1284
    %v1317 = vunpack.c.l.b16 %v1285
    %v1318 = vunpack.c.l.b16 %v1286
    %v1319 = vpack.c.b16 %v1304, %v1303
    %v1320 = vpack.c.b16 %v1306, %v1305
    %v1321 = vpack.c.b16 %v1308, %v1307
    %v1322 = vpack.c.b16 %v1310, %v1309
    %v1323 = vpack.c.b16 %v1312, %v1311
    %v1324 = vpack.c.b16 %v1314, %v1313
    %v1325 = vpack.c.b16 %v1316, %v1315
    %v1326 = vpack.c.b16 %v1318, %v1317
    %1335 = vmatprep.subr.bf16.mxu0 0
    %1336 = vmatpush1.bf16.msra.mxu0 %v1319
    %1337 = vmatprep.subr.bf16.mxu0 0
    %1338 = vmatpush1.bf16.msra.mxu0 %v1320
    %1339 = vmatprep.subr.bf16.mxu0 0
    %1340 = vmatpush1.bf16.msra.mxu0 %v1321
    %1341 = vmatprep.subr.bf16.mxu0 0
    %1342 = vmatpush1.bf16.msra.mxu0 %v1322
    %1343 = vmatprep.subr.bf16.mxu0 0
    %1344 = vmatpush1.bf16.msra.mxu0 %v1323
    %1345 = vmatprep.subr.bf16.mxu0 0
    %1346 = vmatpush1.bf16.msra.mxu0 %v1324
    %1347 = vmatprep.subr.bf16.mxu0 0
    %1348 = vmatpush1.bf16.msra.mxu0 %v1325
    %1349 = vmatprep.subr.bf16.mxu0 0
    %1350 = vmatpush1.bf16.msra.mxu0 %v1326
    %1351 = vmatprep.subr.bf16.mxu0 0
    %1352 = vmatpush1.bf16.msra.mxu0 0
    %1353 = vmatprep.subr.bf16.mxu0 0
    %1354 = vmatpush1.bf16.msra.mxu0 0
    %1355 = vmatprep.subr.bf16.mxu0 0
    %1356 = vmatpush1.bf16.msra.mxu0 0
    %1357 = vmatprep.subr.bf16.mxu0 0
    %1358 = vmatpush1.bf16.msra.mxu0 0
    %1359 = vmatprep.subr.bf16.mxu0 0
    %1360 = vmatpush1.bf16.msra.mxu0 0
    %1361 = vmatprep.subr.bf16.mxu0 0
    %1362 = vmatpush1.bf16.msra.mxu0 0
    %1363 = vmatprep.subr.bf16.mxu0 0
    %1364 = vmatpush1.bf16.msra.mxu0 0
    %1365 = vmatprep.subr.bf16.mxu0 0
    %1366 = vmatpush1.bf16.msra.mxu0 0
    %1367 = vmatprep.mubr.bf16.mxu0 0
    %1368 = vmatmul.mubr.bf16.gmra.mrb[0].mxu0 %v1255
    %v1369 = vpop.f32.mrb[0].mxu0
    %v1370 = vadd.f32 0.0, %v1369
    %v1371 = vpop.f32.mrb[0].mxu0
    %v1372 = vpop.f32.mrb[0].mxu0
    %v1373 = vadd.f32 0.0, %v1372
    %v1374 = vpop.f32.mrb[0].mxu0
    %1375 = vmatprep.mubr.bf16.mxu0 0
    %1376 = vmatmul.mubr.bf16.gmra.mrb[0].mxu0 %v1256
    %v1377 = vpop.f32.mrb[0].mxu0
    %v1378 = vadd.f32 0.0, %v1377
    %v1379 = vpop.f32.mrb[0].mxu0
    %v1380 = vpop.f32.mrb[0].mxu0
    %v1381 = vadd.f32 0.0, %v1380
    %v1382 = vpop.f32.mrb[0].mxu0
    %1383 = vmatprep.mubr.bf16.mxu0 0
    %1384 = vmatmul.mubr.bf16.gmra.mrb[0].mxu0 %v1257
    %v1385 = vpop.f32.mrb[0].mxu0
    %v1386 = vadd.f32 0.0, %v1385
    %v1387 = vpop.f32.mrb[0].mxu0
    %v1388 = vpop.f32.mrb[0].mxu0
    %v1389 = vadd.f32 0.0, %v1388
    %v1390 = vpop.f32.mrb[0].mxu0
    %1391 = vmatprep.mubr.bf16.mxu0 0
    %1392 = vmatmul.mubr.bf16.gmra.mrb[0].mxu0 %v1258
    %v1393 = vpop.f32.mrb[0].mxu0
    %v1394 = vadd.f32 0.0, %v1393
    %v1395 = vpop.f32.mrb[0].mxu0
    %v1396 = vpop.f32.mrb[0].mxu0
    %v1397 = vadd.f32 0.0, %v1396
    %v1398 = vpop.f32.mrb[0].mxu0
    %1399 = vmatprep.mubr.bf16.mxu0 0
    %1400 = vmatmul.mubr.bf16.gmra.mrb[0].mxu0 %v1259
    %v1401 = vpop.f32.mrb[0].mxu0
    %v1402 = vadd.f32 0.0, %v1401
    %v1403 = vpop.f32.mrb[0].mxu0
    %v1404 = vpop.f32.mrb[0].mxu0
    %v1405 = vadd.f32 0.0, %v1404
    %v1406 = vpop.f32.mrb[0].mxu0
    %1407 = vmatprep.mubr.bf16.mxu0 0
    %1408 = vmatmul.mubr.bf16.gmra.mrb[0].mxu0 %v1260
    %v1409 = vpop.f32.mrb[0].mxu0
    %v1410 = vadd.f32 0.0, %v1409
    %v1411 = vpop.f32.mrb[0].mxu0
    %v1412 = vpop.f32.mrb[0].mxu0
    %v1413 = vadd.f32 0.0, %v1412
    %v1414 = vpop.f32.mrb[0].mxu0
    %1415 = vmatprep.mubr.bf16.mxu0 0
    %1416 = vmatmul.mubr.bf16.gmra.mrb[0].mxu0 %v1261
    %v1417 = vpop.f32.mrb[0].mxu0
    %v1418 = vadd.f32 0.0, %v1417
    %v1419 = vpop.f32.mrb[0].mxu0
    %v1420 = vpop.f32.mrb[0].mxu0
    %v1421 = vadd.f32 0.0, %v1420
    %v1422 = vpop.f32.mrb[0].mxu0
    %1423 = vmatprep.mubr.bf16.mxu0 0
    %1424 = vmatmul.mubr.bf16.gmra.mrb[0].mxu0 %v1262
    %v1425 = vpop.f32.mrb[0].mxu0
    %v1426 = vadd.f32 0.0, %v1425
    %v1427 = vpop.f32.mrb[0].mxu0
    %v1428 = vpop.f32.mrb[0].mxu0
    %v1429 = vadd.f32 0.0, %v1428
    %v1430 = vpop.f32.mrb[0].mxu0
    %1431 = vmatprep.mubr.bf16.mxu0 0
    %1432 = vmatmul.mubr.bf16.gmra.mrb[0].mxu0 %v1263
    %v1433 = vpop.f32.mrb[0].mxu0
    %v1434 = vadd.f32 0.0, %v1433
    %v1435 = vpop.f32.mrb[0].mxu0
    %v1436 = vpop.f32.mrb[0].mxu0
    %v1437 = vadd.f32 0.0, %v1436
    %v1438 = vpop.f32.mrb[0].mxu0
    %1439 = vmatprep.mubr.bf16.mxu0 0
    %1440 = vmatmul.mubr.bf16.gmra.mrb[0].mxu0 %v1264
    %v1441 = vpop.f32.mrb[0].mxu0
    %v1442 = vadd.f32 0.0, %v1441
    %v1443 = vpop.f32.mrb[0].mxu0
    %v1444 = vpop.f32.mrb[0].mxu0
    %v1445 = vadd.f32 0.0, %v1444
    %v1446 = vpop.f32.mrb[0].mxu0
    %1447 = vmatprep.mubr.bf16.mxu0 0
    %1448 = vmatmul.mubr.bf16.gmra.mrb[0].mxu0 %v1265
    %v1449 = vpop.f32.mrb[0].mxu0
    %v1450 = vadd.f32 0.0, %v1449
    %v1451 = vpop.f32.mrb[0].mxu0
    %v1452 = vpop.f32.mrb[0].mxu0
    %v1453 = vadd.f32 0.0, %v1452
    %v1454 = vpop.f32.mrb[0].mxu0
    %1455 = vmatprep.mubr.bf16.mxu0 0
    %1456 = vmatmul.mubr.bf16.gmra.mrb[0].mxu0 %v1266
    %v1457 = vpop.f32.mrb[0].mxu0
    %v1458 = vadd.f32 0.0, %v1457
    %v1459 = vpop.f32.mrb[0].mxu0
    %v1460 = vpop.f32.mrb[0].mxu0
    %v1461 = vadd.f32 0.0, %v1460
    %v1462 = vpop.f32.mrb[0].mxu0
    %1463 = vmatprep.mubr.bf16.mxu0 0
    %1464 = vmatmul.mubr.bf16.gmra.mrb[0].mxu0 %v1267
    %v1465 = vpop.f32.mrb[0].mxu0
    %v1466 = vadd.f32 0.0, %v1465
    %v1467 = vpop.f32.mrb[0].mxu0
    %v1468 = vpop.f32.mrb[0].mxu0
    %v1469 = vadd.f32 0.0, %v1468
    %v1470 = vpop.f32.mrb[0].mxu0
    %1471 = vmatprep.mubr.bf16.mxu0 0
    %1472 = vmatmul.mubr.bf16.gmra.mrb[0].mxu0 %v1268
    %v1473 = vpop.f32.mrb[0].mxu0
    %v1474 = vadd.f32 0.0, %v1473
    %v1475 = vpop.f32.mrb[0].mxu0
    %v1476 = vpop.f32.mrb[0].mxu0
    %v1477 = vadd.f32 0.0, %v1476
    %v1478 = vpop.f32.mrb[0].mxu0
    %1479 = vmatprep.mubr.bf16.mxu0 0
    %1480 = vmatmul.mubr.bf16.gmra.mrb[0].mxu0 %v1269
    %v1481 = vpop.f32.mrb[0].mxu0
    %v1482 = vadd.f32 0.0, %v1481
    %v1483 = vpop.f32.mrb[0].mxu0
    %v1484 = vpop.f32.mrb[0].mxu0
    %v1485 = vadd.f32 0.0, %v1484
    %v1486 = vpop.f32.mrb[0].mxu0
    %1487 = vmatprep.mubr.bf16.mxu0 0
    %1488 = vmatmul.mubr.bf16.gmra.mrb[0].mxu0 %v1270
    %v1489 = vpop.f32.mrb[0].mxu0
    %v1490 = vadd.f32 0.0, %v1489
    %v1491 = vpop.f32.mrb[0].mxu0
    %v1492 = vpop.f32.mrb[0].mxu0
    %v1493 = vadd.f32 0.0, %v1492
    %v1494 = vpop.f32.mrb[0].mxu0
    %1495 = vdwg.mxu0
    %v1496 = vpack.c.bf16 %v1373, %v1370
    %v1497 = vpack.c.bf16 %v1381, %v1378
    %v1498 = vpack.c.bf16 %v1389, %v1386
    %v1499 = vpack.c.bf16 %v1397, %v1394
    %v1500 = vpack.c.bf16 %v1405, %v1402
    %v1501 = vpack.c.bf16 %v1413, %v1410
    %v1502 = vpack.c.bf16 %v1421, %v1418
    %v1503 = vpack.c.bf16 %v1429, %v1426
    %v1504 = vpack.c.bf16 %v1437, %v1434
    %v1505 = vpack.c.bf16 %v1445, %v1442
    %v1506 = vpack.c.bf16 %v1453, %v1450
    %v1507 = vpack.c.bf16 %v1461, %v1458
    %v1508 = vpack.c.bf16 %v1469, %v1466
    %v1509 = vpack.c.bf16 %v1477, %v1474
    %v1510 = vpack.c.bf16 %v1485, %v1482
    %v1511 = vpack.c.bf16 %v1493, %v1490
    %v1512 = vld [vmem:[%s7] sm:$0x1]
    %v1514 = vlaneseq
    %v1515 = vshrl.u32 %v1514, 7
    %v1516 = vsub.s32 0, %v1515
    %v1517 = vrot.slane %v1512, %v1516
    %1519 = vmatprep.subr.bf16.mxu0 0
    %1520 = vmatpush1.bf16.msra.mxu0 %v1496
    %1521 = vmatprep.subr.bf16.mxu0 0
    %1522 = vmatpush1.bf16.msra.mxu0 %v1497
    %1523 = vmatprep.subr.bf16.mxu0 0
    %1524 = vmatpush1.bf16.msra.mxu0 %v1498
    %1525 = vmatprep.subr.bf16.mxu0 0
    %1526 = vmatpush1.bf16.msra.mxu0 %v1499
    %1527 = vmatprep.subr.bf16.mxu0 0
    %1528 = vmatpush1.bf16.msra.mxu0 %v1500
    %1529 = vmatprep.subr.bf16.mxu0 0
    %1530 = vmatpush1.bf16.msra.mxu0 %v1501
    %1531 = vmatprep.subr.bf16.mxu0 0
    %1532 = vmatpush1.bf16.msra.mxu0 %v1502
    %1533 = vmatprep.subr.bf16.mxu0 0
    %1534 = vmatpush1.bf16.msra.mxu0 %v1503
    %1535 = vmatprep.subr.bf16.mxu0 0
    %1536 = vmatpush1.bf16.msra.mxu0 %v1504
    %1537 = vmatprep.subr.bf16.mxu0 0
    %1538 = vmatpush1.bf16.msra.mxu0 %v1505
    %1539 = vmatprep.subr.bf16.mxu0 0
    %1540 = vmatpush1.bf16.msra.mxu0 %v1506
    %1541 = vmatprep.subr.bf16.mxu0 0
    %1542 = vmatpush1.bf16.msra.mxu0 %v1507
    %1543 = vmatprep.subr.bf16.mxu0 0
    %1544 = vmatpush1.bf16.msra.mxu0 %v1508
    %1545 = vmatprep.subr.bf16.mxu0 0
    %1546 = vmatpush1.bf16.msra.mxu0 %v1509
    %1547 = vmatprep.subr.bf16.mxu0 0
    %1548 = vmatpush1.bf16.msra.mxu0 %v1510
    %1549 = vmatprep.subr.bf16.mxu0 0
    %1550 = vmatpush1.bf16.msra.mxu0 %v1511
    %1551 = vmatprep.mubr.bf16.mxu0 %v542
    %1552 = vmatmul.mubr.bf16.gmra.mrb[0].mxu0 %v541
    %v1553 = vpop.f32.mrb[0].mxu0
    %v1554 = vadd.f32 %v1517, %v1553
    %v1555 = vpop.f32.mrb[0].mxu0
    %v1556 = vpop.f32.mrb[0].mxu0
    %v1557 = vadd.f32 %v1517, %v1556
    %v1558 = vpop.f32.mrb[0].mxu0
    %1559 = vmatprep.mubr.bf16.mxu0 %v544
    %1560 = vmatmul.mubr.bf16.gmra.mrb[0].mxu0 %v543
    %v1561 = vpop.f32.mrb[0].mxu0
    %v1562 = vadd.f32 %v1517, %v1561
    %v1563 = vpop.f32.mrb[0].mxu0
    %v1564 = vpop.f32.mrb[0].mxu0
    %v1565 = vadd.f32 %v1517, %v1564
    %v1566 = vpop.f32.mrb[0].mxu0
    %1567 = vmatprep.mubr.bf16.mxu0 %v546
    %1568 = vmatmul.mubr.bf16.gmra.mrb[0].mxu0 %v545
    %v1569 = vpop.f32.mrb[0].mxu0
    %v1570 = vadd.f32 %v1517, %v1569
    %v1571 = vpop.f32.mrb[0].mxu0
    %v1572 = vpop.f32.mrb[0].mxu0
    %v1573 = vadd.f32 %v1517, %v1572
    %v1574 = vpop.f32.mrb[0].mxu0
    %1575 = vmatprep.mubr.bf16.mxu0 %v548
    %1576 = vmatmul.mubr.bf16.gmra.mrb[0].mxu0 %v547
    %v1577 = vpop.f32.mrb[0].mxu0
    %v1578 = vadd.f32 %v1517, %v1577
    %v1579 = vpop.f32.mrb[0].mxu0
    %v1580 = vpop.f32.mrb[0].mxu0
    %v1581 = vadd.f32 %v1517, %v1580
    %v1582 = vpop.f32.mrb[0].mxu0
    %1583 = vmatprep.mubr.bf16.mxu0 %v550
    %1584 = vmatmul.mubr.bf16.gmra.mrb[0].mxu0 %v549
    %v1585 = vpop.f32.mrb[0].mxu0
    %v1586 = vadd.f32 %v1517, %v1585
    %v1587 = vpop.f32.mrb[0].mxu0
    %v1588 = vpop.f32.mrb[0].mxu0
    %v1589 = vadd.f32 %v1517, %v1588
    %v1590 = vpop.f32.mrb[0].mxu0
    %1591 = vmatprep.mubr.bf16.mxu0 %v552
    %1592 = vmatmul.mubr.bf16.gmra.mrb[0].mxu0 %v551
    %v1593 = vpop.f32.mrb[0].mxu0
    %v1594 = vadd.f32 %v1517, %v1593
    %v1595 = vpop.f32.mrb[0].mxu0
    %v1596 = vpop.f32.mrb[0].mxu0
    %v1597 = vadd.f32 %v1517, %v1596
    %v1598 = vpop.f32.mrb[0].mxu0
    %1599 = vmatprep.mubr.bf16.mxu0 %v554
    %1600 = vmatmul.mubr.bf16.gmra.mrb[0].mxu0 %v553
    %v1601 = vpop.f32.mrb[0].mxu0
    %v1602 = vadd.f32 %v1517, %v1601
    %v1603 = vpop.f32.mrb[0].mxu0
    %v1604 = vpop.f32.mrb[0].mxu0
    %v1605 = vadd.f32 %v1517, %v1604
    %v1606 = vpop.f32.mrb[0].mxu0
    %1607 = vmatprep.mubr.bf16.mxu0 %v556
    %1608 = vmatmul.mubr.bf16.gmra.mrb[0].mxu0 %v555
    %v1609 = vpop.f32.mrb[0].mxu0
    %v1610 = vadd.f32 %v1517, %v1609
    %v1611 = vpop.f32.mrb[0].mxu0
    %v1612 = vpop.f32.mrb[0].mxu0
    %v1613 = vadd.f32 %v1517, %v1612
    %v1614 = vpop.f32.mrb[0].mxu0
    %1615 = vmatprep.mubr.bf16.mxu0 %v558
    %1616 = vmatmul.mubr.bf16.gmra.mrb[0].mxu0 %v557
    %v1617 = vpop.f32.mrb[0].mxu0
    %v1618 = vadd.f32 %v1517, %v1617
    %v1619 = vpop.f32.mrb[0].mxu0
    %v1620 = vpop.f32.mrb[0].mxu0
    %v1621 = vadd.f32 %v1517, %v1620
    %v1622 = vpop.f32.mrb[0].mxu0
    %1623 = vmatprep.mubr.bf16.mxu0 %v560
    %1624 = vmatmul.mubr.bf16.gmra.mrb[0].mxu0 %v559
    %v1625 = vpop.f32.mrb[0].mxu0
    %v1626 = vadd.f32 %v1517, %v1625
    %v1627 = vpop.f32.mrb[0].mxu0
    %v1628 = vpop.f32.mrb[0].mxu0
    %v1629 = vadd.f32 %v1517, %v1628
    %v1630 = vpop.f32.mrb[0].mxu0
    %1631 = vmatprep.mubr.bf16.mxu0 %v562
    %1632 = vmatmul.mubr.bf16.gmra.mrb[0].mxu0 %v561
    %v1633 = vpop.f32.mrb[0].mxu0
    %v1634 = vadd.f32 %v1517, %v1633
    %v1635 = vpop.f32.mrb[0].mxu0
    %v1636 = vpop.f32.mrb[0].mxu0
    %v1637 = vadd.f32 %v1517, %v1636
    %v1638 = vpop.f32.mrb[0].mxu0
    %1639 = vmatprep.mubr.bf16.mxu0 %v564
    %1640 = vmatmul.mubr.bf16.gmra.mrb[0].mxu0 %v563
    %v1641 = vpop.f32.mrb[0].mxu0
    %v1642 = vadd.f32 %v1517, %v1641
    %v1643 = vpop.f32.mrb[0].mxu0
    %v1644 = vpop.f32.mrb[0].mxu0
    %v1645 = vadd.f32 %v1517, %v1644
    %v1646 = vpop.f32.mrb[0].mxu0
    %1647 = vmatprep.mubr.bf16.mxu0 %v566
    %1648 = vmatmul.mubr.bf16.gmra.mrb[0].mxu0 %v565
    %v1649 = vpop.f32.mrb[0].mxu0
    %v1650 = vadd.f32 %v1517, %v1649
    %v1651 = vpop.f32.mrb[0].mxu0
    %v1652 = vpop.f32.mrb[0].mxu0
    %v1653 = vadd.f32 %v1517, %v1652
    %v1654 = vpop.f32.mrb[0].mxu0
    %1655 = vmatprep.mubr.bf16.mxu0 %v568
    %1656 = vmatmul.mubr.bf16.gmra.mrb[0].mxu0 %v567
    %v1657 = vpop.f32.mrb[0].mxu0
    %v1658 = vadd.f32 %v1517, %v1657
    %v1659 = vpop.f32.mrb[0].mxu0
    %v1660 = vpop.f32.mrb[0].mxu0
    %v1661 = vadd.f32 %v1517, %v1660
    %v1662 = vpop.f32.mrb[0].mxu0
    %1663 = vmatprep.mubr.bf16.mxu0 %v570
    %1664 = vmatmul.mubr.bf16.gmra.mrb[0].mxu0 %v569
    %v1665 = vpop.f32.mrb[0].mxu0
    %v1666 = vadd.f32 %v1517, %v1665
    %v1667 = vpop.f32.mrb[0].mxu0
    %v1668 = vpop.f32.mrb[0].mxu0
    %v1669 = vadd.f32 %v1517, %v1668
    %v1670 = vpop.f32.mrb[0].mxu0
    %1671 = vmatprep.mubr.bf16.mxu0 %v572
    %1672 = vmatmul.mubr.bf16.gmra.mrb[0].mxu0 %v571
    %v1673 = vpop.f32.mrb[0].mxu0
    %v1674 = vadd.f32 %v1517, %v1673
    %v1675 = vpop.f32.mrb[0].mxu0
    %v1676 = vpop.f32.mrb[0].mxu0
    %v1677 = vadd.f32 %v1517, %v1676
    %v1678 = vpop.f32.mrb[0].mxu0
    %1679 = vdwg.mxu0
    %v1680 = vmax.f32 %v1554, 0.0
    %v1681 = vmax.f32 %v1557, 0.0
    %v1682 = vmax.f32 %v1562, 0.0
    %v1683 = vmax.f32 %v1565, 0.0
    %v1684 = vmax.f32 %v1570, 0.0
    %v1685 = vmax.f32 %v1573, 0.0
    %v1686 = vmax.f32 %v1578, 0.0
    %v1687 = vmax.f32 %v1581, 0.0
    %v1688 = vmax.f32 %v1586, 0.0
    %v1689 = vmax.f32 %v1589, 0.0
    %v1690 = vmax.f32 %v1594, 0.0
    %v1691 = vmax.f32 %v1597, 0.0
    %v1692 = vmax.f32 %v1602, 0.0
    %v1693 = vmax.f32 %v1605, 0.0
    %v1694 = vmax.f32 %v1610, 0.0
    %v1695 = vmax.f32 %v1613, 0.0
    %v1696 = vmax.f32 %v1618, 0.0
    %v1697 = vmax.f32 %v1621, 0.0
    %v1698 = vmax.f32 %v1626, 0.0
    %v1699 = vmax.f32 %v1629, 0.0
    %v1700 = vmax.f32 %v1634, 0.0
    %v1701 = vmax.f32 %v1637, 0.0
    %v1702 = vmax.f32 %v1642, 0.0
    %v1703 = vmax.f32 %v1645, 0.0
    %v1704 = vmax.f32 %v1650, 0.0
    %v1705 = vmax.f32 %v1653, 0.0
    %v1706 = vmax.f32 %v1658, 0.0
    %v1707 = vmax.f32 %v1661, 0.0
    %v1708 = vmax.f32 %v1666, 0.0
    %v1709 = vmax.f32 %v1669, 0.0
    %v1710 = vmax.f32 %v1674, 0.0
    %v1711 = vmax.f32 %v1677, 0.0
    %v1712 = vpack.c.bf16 %v1681, %v1680
    %v1713 = vpack.c.bf16 %v1683, %v1682
    %v1714 = vpack.c.bf16 %v1685, %v1684
    %v1715 = vpack.c.bf16 %v1687, %v1686
    %v1716 = vpack.c.bf16 %v1689, %v1688
    %v1717 = vpack.c.bf16 %v1691, %v1690
    %v1718 = vpack.c.bf16 %v1693, %v1692
    %v1719 = vpack.c.bf16 %v1695, %v1694
    %v1720 = vpack.c.bf16 %v1697, %v1696
    %v1721 = vpack.c.bf16 %v1699, %v1698
    %v1722 = vpack.c.bf16 %v1701, %v1700
    %v1723 = vpack.c.bf16 %v1703, %v1702
    %v1724 = vpack.c.bf16 %v1705, %v1704
    %v1725 = vpack.c.bf16 %v1707, %v1706
    %v1726 = vpack.c.bf16 %v1709, %v1708
    %v1727 = vpack.c.bf16 %v1711, %v1710
    %v1728 = vld [vmem:[%s8] sm:$0xff]
    %v1730 = vunpack.c.l.b16 %v1728
    %v1731 = vunpack.c.h.b16 %v1728
    %v1732 = vpack.c.b16 %v1730, %v1730
    %v1733 = vpack.c.b16 %v1731, %v1731
    %1736 = vmatprep.subr.bf16.mxu0 0
    %1737 = vmatpush1.bf16.msra.mxu0 %v1712
    %1738 = vmatprep.subr.bf16.mxu0 0
    %1739 = vmatpush1.bf16.msra.mxu0 %v1713
    %1740 = vmatprep.subr.bf16.mxu0 0
    %1741 = vmatpush1.bf16.msra.mxu0 %v1714
    %1742 = vmatprep.subr.bf16.mxu0 0
    %1743 = vmatpush1.bf16.msra.mxu0 %v1715
    %1744 = vmatprep.subr.bf16.mxu0 0
    %1745 = vmatpush1.bf16.msra.mxu0 %v1716
    %1746 = vmatprep.subr.bf16.mxu0 0
    %1747 = vmatpush1.bf16.msra.mxu0 %v1717
    %1748 = vmatprep.subr.bf16.mxu0 0
    %1749 = vmatpush1.bf16.msra.mxu0 %v1718
    %1750 = vmatprep.subr.bf16.mxu0 0
    %1751 = vmatpush1.bf16.msra.mxu0 %v1719
    %1752 = vmatprep.subr.bf16.mxu0 0
    %1753 = vmatpush1.bf16.msra.mxu0 %v1720
    %1754 = vmatprep.subr.bf16.mxu0 0
    %1755 = vmatpush1.bf16.msra.mxu0 %v1721
    %1756 = vmatprep.subr.bf16.mxu0 0
    %1757 = vmatpush1.bf16.msra.mxu0 %v1722
    %1758 = vmatprep.subr.bf16.mxu0 0
    %1759 = vmatpush1.bf16.msra.mxu0 %v1723
    %1760 = vmatprep.subr.bf16.mxu0 0
    %1761 = vmatpush1.bf16.msra.mxu0 %v1724
    %1762 = vmatprep.subr.bf16.mxu0 0
    %1763 = vmatpush1.bf16.msra.mxu0 %v1725
    %1764 = vmatprep.subr.bf16.mxu0 0
    %1765 = vmatpush1.bf16.msra.mxu0 %v1726
    %1766 = vmatprep.subr.bf16.mxu0 0
    %1767 = vmatpush1.bf16.msra.mxu0 %v1727
    %1768 = vmatprep.mubr.bf16.mxu0 %v1733
    %1769 = vmatmul.mubr.bf16.gmra.mrb[0].mxu0 %v1732
    %v1770 = vpop.f32.mrb[0].mxu0
    %v1771 = vadd.f32 0.0, %v1770
    %v1772 = vpop.f32.mrb[0].mxu0
    %v1773 = vpop.f32.mrb[0].mxu0
    %v1774 = vpop.f32.mrb[0].mxu0
    %1775 = vdwg.mxu0
    %v1776 = vld [vmem:[%s9] sm:$0xff]
    %1778 = vset.pattern.permute.xlu0 0
    %1779 = vperm.xlu0 %1778, %v1776
    %v1780 = vpop.permute.xlu0 %1779
    %v1782 = vmul.f32 %v1771, %v1780
    %1783 = vst [vmem:[#allocation2] sm:$0xff] %v1782
    // Predicated region
    $region42: #{gcn_forward.1} parent=1 // pred_check
      _
    $region43: #{gcn_forward.1} parent=1 // pred_check_branch
      %1785 = sbr.rel (0) target = $region45
    $region44: #{gcn_forward.1} parent=1 // pred_region
      %s1787 = ssub.s32 128, 128
      %1788 = vsyncadd [#allocation3], %s1787
      %s1790 = sshll.u32 [#allocation2], 4
      %s1791 = int_to_ptr.vmem [resolvable:$true] %s1790
      %1793 = dma.vmem_to_hbm [thread:$0]  %s1791, 128, %s10, [#allocation3]
    $region45: #{gcn_forward.1} parent=1 // pred_fallthru
      _
    // Predicated region
    $region46: #{gcn_forward.1} parent=1 // pred_check
      _
    $region47: #{gcn_forward.1} parent=1 // pred_check_branch
      %1795 = sbr.rel (0) target = $region49
    $region48: #{gcn_forward.1} parent=1 // pred_region
      %1796 = dma.done [#allocation3], 128
    $region49: #{gcn_forward.1} parent=1 // pred_fallthru
      _
    %1797 = vsyncpa [#allocation3], 1

</llo_original>
